<compile_context>
chip_gen: v7x
topology: tpu7x:2x2x1
jax: 0.10.0
libtpu: 0.0.40
codegen_flags: <defaults>
</compile_context>

<pallas_src>
import numpy as np
import jax
import jax.numpy as jnp
from jax.experimental import pallas as pl
from jax.experimental.pallas import tpu as pltpu


# ----------------------------- Pallas kernels ------------------------------

def _conv_mat_relu_kernel(x_ref, w_ref, b_ref, o_ref):
    """Per-sample: o = relu(w @ x + b).  x:(1,K,M)  w:(cout,K)  b:(cout,1)."""
    y = jnp.dot(w_ref[...], x_ref[0], preferred_element_type=jnp.float32)
    o_ref[0] = jnp.maximum(y + b_ref[...], 0.0).astype(o_ref.dtype)


def _postpool_kernel(xpf_ref, x1_ref, csel_ref, bitile_ref,
                     amax_ref, bmax_ref, ar1_ref, br1_ref, ar2_ref, br2_ref,
                     wf_ref, bf_ref, w4_ref, b4_ref, o_ref):
    """Fused per-sample post-pool subgraph of ESA.

    xpf:    (1, 1, cm*P)  pooled map, flattened per sample as (ci*P + p)
    x1:     (1, cm, M)    conv1 output (bf16), M = H*W
    csel:   (cm, cm*P)    one-hot channel-selection mask (un-flatten helper)
    bitile: (cm*P, M)     bilinear interpolation matrix tiled over channels
    a*:     (cm*P, cm*P)  precombined 3x3 / stride-1 / pad-1 conv operators
    b*:     (1, cm*P)     per-pixel-repeated biases for the pooled convs
    wf/bf, w4/b4:         1x1 conv weights / biases
    out:    (1, C, M)     z * sigmoid(z), z = relu(conv4(upsample + conv_f(x1)))
    """
    v = xpf_ref[0]                                            # (1, cm*P) f32

    # conv_max: 3x3, stride 1, pad 1, + ReLU   (single precombined dot)
    f1 = jnp.maximum(
        jnp.dot(v, amax_ref[...], preferred_element_type=jnp.float32)
        + bmax_ref[...], 0.0)
    # conv3 = ResBlock: x + conv3x3(relu(conv3x3(x)))
    t1 = jnp.maximum(
        jnp.dot(f1, ar1_ref[...], preferred_element_type=jnp.float32)
        + br1_ref[...], 0.0)
    f2 = f1 + jnp.dot(t1, ar2_ref[...], preferred_element_type=jnp.float32) \
            + br2_ref[...]                                    # (1, cm*P)

    # bilinear upsample to (H, W): channel-select (VPU) + one interp matmul
    f2d = csel_ref[...] * f2                                  # (cm, cm*P)
    up = jnp.dot(f2d, bitile_ref[...],
                 preferred_element_type=jnp.float32)          # (cm, M)

    # conv_f on the saved high-res branch: 1x1 + ReLU
    x1b = x1_ref[0].astype(jnp.float32)                       # (cm, M)
    rf = jnp.maximum(
        jnp.dot(wf_ref[...], x1b, preferred_element_type=jnp.float32)
        + bf_ref[...], 0.0)

    # conv4(up + res): 1x1, cm -> C, + ReLU, then self-gate z * sigmoid(z)
    z = jnp.maximum(
        jnp.dot(w4_ref[...], up + rf, preferred_element_type=jnp.float32)
        + b4_ref[...], 0.0)
    s = pl.reciprocal(1.0 + jnp.exp(-z), approx=True)         # EUP exp + rcp
    o_ref[0] = (z * s).astype(o_ref.dtype)


# --------------------------- pallas_call wrappers ---------------------------

def conv_mat_relu_batched(x, w, b, out_dtype):
    """relu(w @ x_b + b) per sample; grid over batch; lane-dense per-row out."""
    n, k, m = x.shape
    cout = w.shape[0]
    return pl.pallas_call(
        _conv_mat_relu_kernel,
        out_shape=jax.ShapeDtypeStruct((n, cout, m), out_dtype),
        grid=(n,),
        in_specs=[
            pl.BlockSpec((1, k, m), lambda bi: (bi, 0, 0)),
            pl.BlockSpec((cout, k), lambda bi: (0, 0)),
            pl.BlockSpec((cout, 1), lambda bi: (0, 0)),
        ],
        out_specs=pl.BlockSpec((1, cout, m), lambda bi: (bi, 0, 0)),
        compiler_params=pltpu.CompilerParams(
            dimension_semantics=("parallel",)),
    )(x, w, b)


def postpool_fused(xpf, x1, csel, bitile, amax, bmaxf, ar1, br1f, ar2, br2f,
                   wf, bf, w4, b4):
    n, cm, m = x1.shape
    cch = w4.shape[0]
    kp = xpf.shape[2]

    def shared(a):
        return pl.BlockSpec(a.shape, lambda bi: (0,) * a.ndim)

    return pl.pallas_call(
        _postpool_kernel,
        out_shape=jax.ShapeDtypeStruct((n, cch, m), jnp.float32),
        grid=(n,),
        in_specs=[
            pl.BlockSpec((1, 1, kp), lambda bi: (bi, 0, 0)),
            pl.BlockSpec((1, cm, m), lambda bi: (bi, 0, 0)),
            shared(csel), shared(bitile),
            shared(amax), shared(bmaxf), shared(ar1), shared(br1f),
            shared(ar2), shared(br2f), shared(wf), shared(bf),
            shared(w4), shared(b4),
        ],
        out_specs=pl.BlockSpec((1, cch, m), lambda bi: (bi, 0, 0)),
        compiler_params=pltpu.CompilerParams(
            dimension_semantics=("parallel",)),
    )(xpf, x1, csel, bitile, amax, bmaxf, ar1, br1f, ar2, br2f, wf, bf, w4, b4)


# ------------------------------ plain-JAX glue ------------------------------
# (tiny reindexing work the review said to leave to XLA / build at trace time)

def _im2col_batched(x_sp, k, stride, pad):
    """(n, c, H, W) -> (n, k*k*c, Ho*Wo); K-order = (tap, channel)."""
    if pad > 0:
        x_sp = jnp.pad(x_sp, ((0, 0), (0, 0), (pad, pad), (pad, pad)))
    n, c, hh, ww = x_sp.shape
    ho = (hh - k) // stride + 1
    wo = (ww - k) // stride + 1
    taps = [x_sp[:, :, i:i + (ho - 1) * stride + 1:stride,
                    j:j + (wo - 1) * stride + 1:stride]
            for i in range(k) for j in range(k)]
    p = jnp.stack(taps, axis=1)                       # (n, k*k, c, ho, wo)
    return p.reshape(n, k * k * c, ho * wo), (ho, wo)


def _maxpool_batched(x_sp, k, stride):
    """(n, c, H, W) -> (n, c, Ho, Wo) max-pool (tiny post-conv2 map, XLA)."""
    n, c, h, w = x_sp.shape
    ho = (h - k) // stride + 1
    wo = (w - k) // stride + 1
    taps = [x_sp[:, :, i:i + (ho - 1) * stride + 1:stride,
                    j:j + (wo - 1) * stride + 1:stride]
            for i in range(k) for j in range(k)]
    return jnp.max(jnp.stack(taps, axis=0), axis=0), (ho, wo)


def _bilinear_axis_matrix(out_size, in_size):
    """1-D interp matrix matching F.interpolate bilinear, align_corners=False."""
    scale = in_size / out_size
    d = np.arange(out_size)
    src = np.maximum((d + 0.5) * scale - 0.5, 0.0)
    i0 = np.minimum(np.floor(src).astype(np.int64), in_size - 1)
    frac = src - i0
    i1 = np.minimum(i0 + 1, in_size - 1)
    m = np.zeros((out_size, in_size), np.float32)
    m[d, i0] += (1.0 - frac)
    m[d, i1] += frac
    return m


def _bilinear_matrix(hp, wp, H, W):
    """(hp*wp, H*W): up[c,:] = f2[c,:] @ BI, shared across the batch."""
    wy = _bilinear_axis_matrix(H, hp)                 # (H, hp)
    wx = _bilinear_axis_matrix(W, wp)                 # (W, wp)
    return np.ascontiguousarray(np.kron(wy, wx).T)    # (hp*wp, H*W)


def _conv3x3_pad1_geom(hp, wp):
    """One-hot T[t, p_in, q_out] for a 3x3 / stride-1 / pad-1 conv on hp x wp."""
    P = hp * wp
    T = np.zeros((9, P, P), np.float32)
    for di in range(3):
        for dj in range(3):
            t = di * 3 + dj
            for io in range(hp):
                for jo in range(wp):
                    ii, jj = io + di - 1, jo + dj - 1
                    if 0 <= ii < hp and 0 <= jj < wp:
                        T[t, ii * wp + jj, io * wp + jo] = 1.0
    return T


def _pooled_conv_operator(w, T):
    """Fold conv weights + geometry into one (cin*P, cout*P) operator."""
    cout, cin = w.shape[0], w.shape[1]
    P = T.shape[1]
    w9 = w.reshape(cout, cin, 9)
    A = jnp.einsum('oct,tpq->cpoq', w9, jnp.asarray(T))
    return A.reshape(cin * P, cout * P)


def _bias_flat(b, P):
    return jnp.repeat(b, P).reshape(1, -1)            # (1, cout*P)


def _w_1x1(w):                   # torch (cout, cin, 1, 1) -> (cout, cin)
    return w.reshape(w.shape[0], w.shape[1])


def _w_3x3_mat(w):               # (cout, cin, 3, 3) -> (cout, 9*cin); K=(tap,cin)
    cout, cin, kh, kw = w.shape
    return jnp.transpose(w, (0, 2, 3, 1)).reshape(cout, kh * kw * cin)


def _b_col(b):
    return b.reshape(-1, 1)


# ------------------------------- ESA forward --------------------------------

def init_esa_params(key, channels=16, reduction=4):
    cm = channels // reduction
    ks = jax.random.split(key, 14)

    def conv(kw, kb, cout, cin, k):
        w = jax.random.normal(kw, (cout, cin, k, k), jnp.float32) * 0.2
        b = jax.random.normal(kb, (cout,), jnp.float32) * 0.05
        return w, b

    p = {}
    p["conv1_w"], p["conv1_b"] = conv(ks[0], ks[1], cm, channels, 1)
    p["conv2_w"], p["conv2_b"] = conv(ks[2], ks[3], cm, cm, 3)
    p["convmax_w"], p["convmax_b"] = conv(ks[4], ks[5], cm, cm, 3)
    p["res_w1"], p["res_b1"] = conv(ks[6], ks[7], cm, cm, 3)
    p["res_w2"], p["res_b2"] = conv(ks[8], ks[9], cm, cm, 3)
    p["convf_w"], p["convf_b"] = conv(ks[10], ks[11], cm, cm, 1)
    p["conv4_w"], p["conv4_b"] = conv(ks[12], ks[13], channels, cm, 1)
    return p


def esa_forward(x_nchw, params):
    n, C, H, W = x_nchw.shape
    cm = params["conv1_w"].shape[0]
    M = H * W

    # batch-leading lane-dense layout: (n, channels, H*W); bf16 MXU operands
    xb = x_nchw.reshape(n, C, M).astype(jnp.bfloat16)

    # K1: conv1 1x1 + ReLU
    x1 = conv_mat_relu_batched(
        xb, _w_1x1(params["conv1_w"]).astype(jnp.bfloat16),
        _b_col(params["conv1_b"]), jnp.bfloat16)              # (n, cm, M) bf16

    # conv2: 3x3, stride 2, pad 0, + ReLU (XLA im2col glue + Pallas matmul)
    # TODO(synk): fold the im2col into the kernel via strided reads at real sizes.
    p2, (h2, w2) = _im2col_batched(x1.reshape(n, cm, H, W), 3, 2, 0)
    px = h2 * w2
    pxp = ((px + 127) // 128) * 128                           # 121 -> 128
    p2 = jnp.pad(p2, ((0, 0), (0, 0), (0, pxp - px)))
    x2 = conv_mat_relu_batched(
        p2, _w_3x3_mat(params["conv2_w"]).astype(jnp.bfloat16),
        _b_col(params["conv2_b"]), jnp.float32)               # (n, cm, 128)
    x2 = x2[:, :, :px].reshape(n, cm, h2, w2)

    # max_pool2d(kernel=7, stride=3) — tiny, left to XLA
    xp, (hp, wp) = _maxpool_batched(x2, 7, 3)
    P = hp * wp
    xpf = xp.reshape(n, 1, cm * P)                            # flat (ci*P + p)

    # Precombined pooled-grid conv operators + shared interpolation matrices
    T = _conv3x3_pad1_geom(hp, wp)
    amax = _pooled_conv_operator(params["convmax_w"], T)
    ar1 = _pooled_conv_operator(params["res_w1"], T)
    ar2 = _pooled_conv_operator(params["res_w2"], T)
    bi = _bilinear_matrix(hp, wp, H, W)                       # (P, M) numpy
    bitile = jnp.asarray(np.tile(bi, (cm, 1)))                # (cm*P, M)
    csel = jnp.asarray(np.kron(np.eye(cm, dtype=np.float32),
                               np.ones((1, P), np.float32)))  # (cm, cm*P)

    # K3: fused conv_max + ResBlock + upsample + conv_f + conv4 + self-gate
    out = postpool_fused(
        xpf, x1, csel, bitile,
        amax, _bias_flat(params["convmax_b"], P),
        ar1, _bias_flat(params["res_b1"], P),
        ar2, _bias_flat(params["res_b2"], P),
        _w_1x1(params["convf_w"]), _b_col(params["convf_b"]),
        _w_1x1(params["conv4_w"]), _b_col(params["conv4_b"]),
    )                                                         # (n, C, M)
    return out.reshape(n, C, H, W)


# ----------------------------------- main -----------------------------------

if __name__ == "__main__":
    channels, reduction = 16, 4
    N, H, W = 2, 24, 24

    key = jax.random.PRNGKey(0)
    kx, kp = jax.random.split(key)
    x = jax.random.normal(kx, (N, channels, H, W), jnp.float32)
    params = init_esa_params(kp, channels, reduction)

    fwd = jax.jit(esa_forward)
    y = jax.block_until_ready(fwd(x, params))

    assert y.shape == (N, channels, H, W), y.shape
    assert bool(jnp.isfinite(y).all())
    print("KERNEL_OK")
</pallas_src>

<mosaic_0001>
module attributes {stable_mosaic.version = 11 : i64} {
  func.func @_conv_mat_relu_kernel(%arg0: i32, %arg1: memref<1x16x576xbf16, #tpu.memory_space<vmem>>, %arg2: memref<4x16xbf16, #tpu.memory_space<vmem>>, %arg3: memref<4x1xf32, #tpu.memory_space<vmem>>, %arg4: memref<1x4x576xbf16, #tpu.memory_space<vmem>>) attributes {dimension_semantics = [#tpu.dimension_semantics<parallel>], iteration_bounds = array<i64: 2>, scalar_prefetch = 0 : i64, scratch_operands = 0 : i64, tpu.core_type = #tpu.core_type<tc>, window_params = [{transform_indices = @transform_0, window_bounds = array<i64: 1, 16, 576>}, {pipeline_mode = #tpu.pipeline_mode<synchronous>, transform_indices = @transform_1, window_bounds = array<i64: 4, 16>}, {pipeline_mode = #tpu.pipeline_mode<synchronous>, transform_indices = @transform_2, window_bounds = array<i64: 4, 1>}, {transform_indices = @transform_3, window_bounds = array<i64: 1, 4, 576>}]} {
    %c0 = arith.constant 0 : index
    %c0_0 = arith.constant 0 : index
    %0 = vector.load %arg2[%c0, %c0_0] : memref<4x16xbf16, #tpu.memory_space<vmem>>, vector<4x16xbf16>
    %c0_1 = arith.constant 0 : index
    %c0_2 = arith.constant 0 : index
    %c0_3 = arith.constant 0 : index
    %1 = vector.load %arg1[%c0_1, %c0_2, %c0_3] : memref<1x16x576xbf16, #tpu.memory_space<vmem>>, vector<1x16x576xbf16>
    %2 = vector.shape_cast %1 : vector<1x16x576xbf16> to vector<16x576xbf16>
    %cst = arith.constant dense<0.000000e+00> : vector<4x576xf32>
    %3 = tpu.matmul %0, %2, %cst {dimension_numbers = #tpu.dot_dimension_numbers<[1], [0], [0], [1], [0, 0, 1, 1], [], []>} : vector<4x16xbf16>, vector<16x576xbf16>, vector<4x576xf32> -> vector<4x576xf32>
    %c0_4 = arith.constant 0 : index
    %c0_5 = arith.constant 0 : index
    %4 = vector.load %arg3[%c0_4, %c0_5] : memref<4x1xf32, #tpu.memory_space<vmem>>, vector<4x1xf32>
    %5 = vector.broadcast %4 : vector<4x1xf32> to vector<4x576xf32>
    %6 = arith.addf %3, %5 : vector<4x576xf32>
    %cst_6 = arith.constant 0.000000e+00 : f32
    %7 = vector.broadcast %cst_6 : f32 to vector<4x576xf32>
    %8 = arith.maximumf %6, %7 : vector<4x576xf32>
    %9 = arith.truncf %8 : vector<4x576xf32> to vector<4x576xbf16>
    %c0_7 = arith.constant 0 : index
    %c0_8 = arith.constant 0 : index
    %c0_9 = arith.constant 0 : index
    %10 = vector.load %arg4[%c0_7, %c0_8, %c0_9] : memref<1x4x576xbf16, #tpu.memory_space<vmem>>, vector<1x4x576xbf16>
    %11 = vector.shape_cast %10 : vector<1x4x576xbf16> to vector<4x576xbf16>
    %12 = vector.shape_cast %9 : vector<4x576xbf16> to vector<1x4x576xbf16>
    tpu.vector_store %arg4[%c0_7, %c0_8, %c0_9], %12 {strides = array<i32>} : memref<1x4x576xbf16, #tpu.memory_space<vmem>>, vector<1x4x576xbf16>,
    return
  }
  func.func @transform_0(%arg0: i32) -> (i32, i32, i32) {
    %c0_i32 = arith.constant 0 : i32
    %c0_i32_0 = arith.constant 0 : i32
    %c0_i32_1 = arith.constant 0 : i32
    return %arg0, %c0_i32, %c0_i32_0 : i32, i32, i32
  }
  func.func @transform_1(%arg0: i32) -> (i32, i32) {
    %c0_i32 = arith.constant 0 : i32
    %c0_i32_0 = arith.constant 0 : i32
    %c0_i32_1 = arith.constant 0 : i32
    return %c0_i32, %c0_i32_0 : i32, i32
  }
  func.func @transform_2(%arg0: i32) -> (i32, i32) {
    %c0_i32 = arith.constant 0 : i32
    %c0_i32_0 = arith.constant 0 : i32
    %c0_i32_1 = arith.constant 0 : i32
    return %c0_i32, %c0_i32_0 : i32, i32
  }
  func.func @transform_3(%arg0: i32) -> (i32, i32, i32) {
    %c0_i32 = arith.constant 0 : i32
    %c0_i32_0 = arith.constant 0 : i32
    %c0_i32_1 = arith.constant 0 : i32
    return %arg0, %c0_i32, %c0_i32_0 : i32, i32, i32
  }
}

module attributes {stable_mosaic.version = 11 : i64} {
  func.func @_conv_mat_relu_kernel(%arg0: i32, %arg1: memref<1x36x128xbf16, #tpu.memory_space<vmem>>, %arg2: memref<4x36xbf16, #tpu.memory_space<vmem>>, %arg3: memref<4x1xf32, #tpu.memory_space<vmem>>, %arg4: memref<1x4x128xf32, #tpu.memory_space<vmem>>) attributes {dimension_semantics = [#tpu.dimension_semantics<parallel>], iteration_bounds = array<i64: 2>, scalar_prefetch = 0 : i64, scratch_operands = 0 : i64, tpu.core_type = #tpu.core_type<tc>, window_params = [{transform_indices = @transform_0, window_bounds = array<i64: 1, 36, 128>}, {pipeline_mode = #tpu.pipeline_mode<synchronous>, transform_indices = @transform_1, window_bounds = array<i64: 4, 36>}, {pipeline_mode = #tpu.pipeline_mode<synchronous>, transform_indices = @transform_2, window_bounds = array<i64: 4, 1>}, {transform_indices = @transform_3, window_bounds = array<i64: 1, 4, 128>}]} {
    %c0 = arith.constant 0 : index
    %c0_0 = arith.constant 0 : index
    %0 = vector.load %arg2[%c0, %c0_0] : memref<4x36xbf16, #tpu.memory_space<vmem>>, vector<4x36xbf16>
    %c0_1 = arith.constant 0 : index
    %c0_2 = arith.constant 0 : index
    %c0_3 = arith.constant 0 : index
    %1 = vector.load %arg1[%c0_1, %c0_2, %c0_3] : memref<1x36x128xbf16, #tpu.memory_space<vmem>>, vector<1x36x128xbf16>
    %2 = vector.shape_cast %1 : vector<1x36x128xbf16> to vector<36x128xbf16>
    %cst = arith.constant dense<0.000000e+00> : vector<4x128xf32>
    %3 = tpu.matmul %0, %2, %cst {dimension_numbers = #tpu.dot_dimension_numbers<[1], [0], [0], [1], [0, 0, 1, 1], [], []>} : vector<4x36xbf16>, vector<36x128xbf16>, vector<4x128xf32> -> vector<4x128xf32>
    %c0_4 = arith.constant 0 : index
    %c0_5 = arith.constant 0 : index
    %4 = vector.load %arg3[%c0_4, %c0_5] : memref<4x1xf32, #tpu.memory_space<vmem>>, vector<4x1xf32>
    %5 = vector.broadcast %4 : vector<4x1xf32> to vector<4x128xf32>
    %6 = arith.addf %3, %5 : vector<4x128xf32>
    %cst_6 = arith.constant 0.000000e+00 : f32
    %7 = vector.broadcast %cst_6 : f32 to vector<4x128xf32>
    %8 = arith.maximumf %6, %7 : vector<4x128xf32>
    %c0_7 = arith.constant 0 : index
    %c0_8 = arith.constant 0 : index
    %c0_9 = arith.constant 0 : index
    %9 = vector.load %arg4[%c0_7, %c0_8, %c0_9] : memref<1x4x128xf32, #tpu.memory_space<vmem>>, vector<1x4x128xf32>
    %10 = vector.shape_cast %9 : vector<1x4x128xf32> to vector<4x128xf32>
    %11 = vector.shape_cast %8 : vector<4x128xf32> to vector<1x4x128xf32>
    tpu.vector_store %arg4[%c0_7, %c0_8, %c0_9], %11 {strides = array<i32>} : memref<1x4x128xf32, #tpu.memory_space<vmem>>, vector<1x4x128xf32>,
    return
  }
  func.func @transform_0(%arg0: i32) -> (i32, i32, i32) {
    %c0_i32 = arith.constant 0 : i32
    %c0_i32_0 = arith.constant 0 : i32
    %c0_i32_1 = arith.constant 0 : i32
    return %arg0, %c0_i32, %c0_i32_0 : i32, i32, i32
  }
  func.func @transform_1(%arg0: i32) -> (i32, i32) {
    %c0_i32 = arith.constant 0 : i32
    %c0_i32_0 = arith.constant 0 : i32
    %c0_i32_1 = arith.constant 0 : i32
    return %c0_i32, %c0_i32_0 : i32, i32
  }
  func.func @transform_2(%arg0: i32) -> (i32, i32) {
    %c0_i32 = arith.constant 0 : i32
    %c0_i32_0 = arith.constant 0 : i32
    %c0_i32_1 = arith.constant 0 : i32
    return %c0_i32, %c0_i32_0 : i32, i32
  }
  func.func @transform_3(%arg0: i32) -> (i32, i32, i32) {
    %c0_i32 = arith.constant 0 : i32
    %c0_i32_0 = arith.constant 0 : i32
    %c0_i32_1 = arith.constant 0 : i32
    return %arg0, %c0_i32, %c0_i32_0 : i32, i32, i32
  }
}

module attributes {stable_mosaic.version = 11 : i64} {
  func.func @_postpool_kernel(%arg0: i32, %arg1: memref<1x1x16xf32, #tpu.memory_space<vmem>>, %arg2: memref<1x4x576xbf16, #tpu.memory_space<vmem>>, %arg3: memref<4x16xf32, #tpu.memory_space<vmem>>, %arg4: memref<16x576xf32, #tpu.memory_space<vmem>>, %arg5: memref<16x16xf32, #tpu.memory_space<vmem>>, %arg6: memref<1x16xf32, #tpu.memory_space<vmem>>, %arg7: memref<16x16xf32, #tpu.memory_space<vmem>>, %arg8: memref<1x16xf32, #tpu.memory_space<vmem>>, %arg9: memref<16x16xf32, #tpu.memory_space<vmem>>, %arg10: memref<1x16xf32, #tpu.memory_space<vmem>>, %arg11: memref<4x4xf32, #tpu.memory_space<vmem>>, %arg12: memref<4x1xf32, #tpu.memory_space<vmem>>, %arg13: memref<16x4xf32, #tpu.memory_space<vmem>>, %arg14: memref<16x1xf32, #tpu.memory_space<vmem>>, %arg15: memref<1x16x576xf32, #tpu.memory_space<vmem>>) attributes {dimension_semantics = [#tpu.dimension_semantics<parallel>], iteration_bounds = array<i64: 2>, scalar_prefetch = 0 : i64, scratch_operands = 0 : i64, tpu.core_type = #tpu.core_type<tc>, window_params = [{transform_indices = @transform_0, window_bounds = array<i64: 1, 1, 16>}, {transform_indices = @transform_1, window_bounds = array<i64: 1, 4, 576>}, {pipeline_mode = #tpu.pipeline_mode<synchronous>, transform_indices = @transform_2, window_bounds = array<i64: 4, 16>}, {pipeline_mode = #tpu.pipeline_mode<synchronous>, transform_indices = @transform_3, window_bounds = array<i64: 16, 576>}, {pipeline_mode = #tpu.pipeline_mode<synchronous>, transform_indices = @transform_4, window_bounds = array<i64: 16, 16>}, {pipeline_mode = #tpu.pipeline_mode<synchronous>, transform_indices = @transform_5, window_bounds = array<i64: 1, 16>}, {pipeline_mode = #tpu.pipeline_mode<synchronous>, transform_indices = @transform_6, window_bounds = array<i64: 16, 16>}, {pipeline_mode = #tpu.pipeline_mode<synchronous>, transform_indices = @transform_7, window_bounds = array<i64: 1, 16>}, {pipeline_mode = #tpu.pipeline_mode<synchronous>, transform_indices = @transform_8, window_bounds = array<i64: 16, 16>}, {pipeline_mode = #tpu.pipeline_mode<synchronous>, transform_indices = @transform_9, window_bounds = array<i64: 1, 16>}, {pipeline_mode = #tpu.pipeline_mode<synchronous>, transform_indices = @transform_10, window_bounds = array<i64: 4, 4>}, {pipeline_mode = #tpu.pipeline_mode<synchronous>, transform_indices = @transform_11, window_bounds = array<i64: 4, 1>}, {pipeline_mode = #tpu.pipeline_mode<synchronous>, transform_indices = @transform_12, window_bounds = array<i64: 16, 4>}, {pipeline_mode = #tpu.pipeline_mode<synchronous>, transform_indices = @transform_13, window_bounds = array<i64: 16, 1>}, {transform_indices = @transform_14, window_bounds = array<i64: 1, 16, 576>}]} {
    %c0 = arith.constant 0 : index
    %c0_0 = arith.constant 0 : index
    %c0_1 = arith.constant 0 : index
    %0 = vector.load %arg1[%c0, %c0_0, %c0_1] : memref<1x1x16xf32, #tpu.memory_space<vmem>>, vector<1x1x16xf32>
    %1 = vector.shape_cast %0 : vector<1x1x16xf32> to vector<1x16xf32>
    %c0_2 = arith.constant 0 : index
    %c0_3 = arith.constant 0 : index
    %2 = vector.load %arg5[%c0_2, %c0_3] : memref<16x16xf32, #tpu.memory_space<vmem>>, vector<16x16xf32>
    %cst = arith.constant dense<0.000000e+00> : vector<1x16xf32>
    %3 = tpu.matmul %1, %2, %cst {dimension_numbers = #tpu.dot_dimension_numbers<[1], [0], [0], [1], [0, 0, 1, 1], [], []>} : vector<1x16xf32>, vector<16x16xf32>, vector<1x16xf32> -> vector<1x16xf32>
    %c0_4 = arith.constant 0 : index
    %c0_5 = arith.constant 0 : index
    %4 = vector.load %arg6[%c0_4, %c0_5] : memref<1x16xf32, #tpu.memory_space<vmem>>, vector<1x16xf32>
    %5 = arith.addf %3, %4 : vector<1x16xf32>
    %cst_6 = arith.constant 0.000000e+00 : f32
    %6 = vector.broadcast %cst_6 : f32 to vector<1x16xf32>
    %7 = arith.maximumf %5, %6 : vector<1x16xf32>
    %c0_7 = arith.constant 0 : index
    %c0_8 = arith.constant 0 : index
    %8 = vector.load %arg7[%c0_7, %c0_8] : memref<16x16xf32, #tpu.memory_space<vmem>>, vector<16x16xf32>
    %cst_9 = arith.constant dense<0.000000e+00> : vector<1x16xf32>
    %9 = tpu.matmul %7, %8, %cst_9 {dimension_numbers = #tpu.dot_dimension_numbers<[1], [0], [0], [1], [0, 0, 1, 1], [], []>} : vector<1x16xf32>, vector<16x16xf32>, vector<1x16xf32> -> vector<1x16xf32>
    %c0_10 = arith.constant 0 : index
    %c0_11 = arith.constant 0 : index
    %10 = vector.load %arg8[%c0_10, %c0_11] : memref<1x16xf32, #tpu.memory_space<vmem>>, vector<1x16xf32>
    %11 = arith.addf %9, %10 : vector<1x16xf32>
    %cst_12 = arith.constant 0.000000e+00 : f32
    %12 = vector.broadcast %cst_12 : f32 to vector<1x16xf32>
    %13 = arith.maximumf %11, %12 : vector<1x16xf32>
    %c0_13 = arith.constant 0 : index
    %c0_14 = arith.constant 0 : index
    %14 = vector.load %arg9[%c0_13, %c0_14] : memref<16x16xf32, #tpu.memory_space<vmem>>, vector<16x16xf32>
    %cst_15 = arith.constant dense<0.000000e+00> : vector<1x16xf32>
    %15 = tpu.matmul %13, %14, %cst_15 {dimension_numbers = #tpu.dot_dimension_numbers<[1], [0], [0], [1], [0, 0, 1, 1], [], []>} : vector<1x16xf32>, vector<16x16xf32>, vector<1x16xf32> -> vector<1x16xf32>
    %16 = arith.addf %7, %15 : vector<1x16xf32>
    %c0_16 = arith.constant 0 : index
    %c0_17 = arith.constant 0 : index
    %17 = vector.load %arg10[%c0_16, %c0_17] : memref<1x16xf32, #tpu.memory_space<vmem>>, vector<1x16xf32>
    %18 = arith.addf %16, %17 : vector<1x16xf32>
    %c0_18 = arith.constant 0 : index
    %c0_19 = arith.constant 0 : index
    %19 = vector.load %arg3[%c0_18, %c0_19] : memref<4x16xf32, #tpu.memory_space<vmem>>, vector<4x16xf32>
    %20 = vector.broadcast %18 : vector<1x16xf32> to vector<4x16xf32>
    %21 = arith.mulf %19, %20 : vector<4x16xf32>
    %c0_20 = arith.constant 0 : index
    %c0_21 = arith.constant 0 : index
    %22 = vector.load %arg4[%c0_20, %c0_21] : memref<16x576xf32, #tpu.memory_space<vmem>>, vector<16x576xf32>
    %cst_22 = arith.constant dense<0.000000e+00> : vector<4x576xf32>
    %23 = tpu.matmul %21, %22, %cst_22 {dimension_numbers = #tpu.dot_dimension_numbers<[1], [0], [0], [1], [0, 0, 1, 1], [], []>} : vector<4x16xf32>, vector<16x576xf32>, vector<4x576xf32> -> vector<4x576xf32>
    %c0_23 = arith.constant 0 : index
    %c0_24 = arith.constant 0 : index
    %c0_25 = arith.constant 0 : index
    %24 = vector.load %arg2[%c0_23, %c0_24, %c0_25] : memref<1x4x576xbf16, #tpu.memory_space<vmem>>, vector<1x4x576xbf16>
    %25 = vector.shape_cast %24 : vector<1x4x576xbf16> to vector<4x576xbf16>
    %26 = arith.extf %25 : vector<4x576xbf16> to vector<4x576xf32>
    %c0_26 = arith.constant 0 : index
    %c0_27 = arith.constant 0 : index
    %27 = vector.load %arg11[%c0_26, %c0_27] : memref<4x4xf32, #tpu.memory_space<vmem>>, vector<4x4xf32>
    %cst_28 = arith.constant dense<0.000000e+00> : vector<4x576xf32>
    %28 = tpu.matmul %27, %26, %cst_28 {dimension_numbers = #tpu.dot_dimension_numbers<[1], [0], [0], [1], [0, 0, 1, 1], [], []>} : vector<4x4xf32>, vector<4x576xf32>, vector<4x576xf32> -> vector<4x576xf32>
    %c0_29 = arith.constant 0 : index
    %c0_30 = arith.constant 0 : index
    %29 = vector.load %arg12[%c0_29, %c0_30] : memref<4x1xf32, #tpu.memory_space<vmem>>, vector<4x1xf32>
    %30 = vector.broadcast %29 : vector<4x1xf32> to vector<4x576xf32>
    %31 = arith.addf %28, %30 : vector<4x576xf32>
    %cst_31 = arith.constant 0.000000e+00 : f32
    %32 = vector.broadcast %cst_31 : f32 to vector<4x576xf32>
    %33 = arith.maximumf %31, %32 : vector<4x576xf32>
    %c0_32 = arith.constant 0 : index
    %c0_33 = arith.constant 0 : index
    %34 = vector.load %arg13[%c0_32, %c0_33] : memref<16x4xf32, #tpu.memory_space<vmem>>, vector<16x4xf32>
    %35 = arith.addf %23, %33 : vector<4x576xf32>
    %cst_34 = arith.constant dense<0.000000e+00> : vector<16x576xf32>
    %36 = tpu.matmul %34, %35, %cst_34 {dimension_numbers = #tpu.dot_dimension_numbers<[1], [0], [0], [1], [0, 0, 1, 1], [], []>} : vector<16x4xf32>, vector<4x576xf32>, vector<16x576xf32> -> vector<16x576xf32>
    %c0_35 = arith.constant 0 : index
    %c0_36 = arith.constant 0 : index
    %37 = vector.load %arg14[%c0_35, %c0_36] : memref<16x1xf32, #tpu.memory_space<vmem>>, vector<16x1xf32>
    %38 = vector.broadcast %37 : vector<16x1xf32> to vector<16x576xf32>
    %39 = arith.addf %36, %38 : vector<16x576xf32>
    %cst_37 = arith.constant 0.000000e+00 : f32
    %40 = vector.broadcast %cst_37 : f32 to vector<16x576xf32>
    %41 = arith.maximumf %39, %40 : vector<16x576xf32>
    %cst_38 = arith.constant 0.000000e+00 : f32
    %42 = vector.broadcast %cst_38 : f32 to vector<16x576xf32>
    %43 = arith.subf %42, %41 : vector<16x576xf32>
    %44 = math.exp %43 : vector<16x576xf32>
    %cst_39 = arith.constant 1.000000e+00 : f32
    %45 = vector.broadcast %cst_39 : f32 to vector<16x576xf32>
    %46 = arith.addf %45, %44 : vector<16x576xf32>
    %47 = tpu.reciprocal %46 {approx = true} : vector<16x576xf32> -> vector<16x576xf32>
    %48 = arith.mulf %41, %47 : vector<16x576xf32>
    %c0_40 = arith.constant 0 : index
    %c0_41 = arith.constant 0 : index
    %c0_42 = arith.constant 0 : index
    %49 = vector.load %arg15[%c0_40, %c0_41, %c0_42] : memref<1x16x576xf32, #tpu.memory_space<vmem>>, vector<1x16x576xf32>
    %50 = vector.shape_cast %49 : vector<1x16x576xf32> to vector<16x576xf32>
    %51 = vector.shape_cast %48 : vector<16x576xf32> to vector<1x16x576xf32>
    tpu.vector_store %arg15[%c0_40, %c0_41, %c0_42], %51 {strides = array<i32>} : memref<1x16x576xf32, #tpu.memory_space<vmem>>, vector<1x16x576xf32>,
    return
  }
  func.func @transform_0(%arg0: i32) -> (i32, i32, i32) {
    %c0_i32 = arith.constant 0 : i32
    %c0_i32_0 = arith.constant 0 : i32
    %c0_i32_1 = arith.constant 0 : i32
    return %arg0, %c0_i32, %c0_i32_0 : i32, i32, i32
  }
  func.func @transform_1(%arg0: i32) -> (i32, i32, i32) {
    %c0_i32 = arith.constant 0 : i32
    %c0_i32_0 = arith.constant 0 : i32
    %c0_i32_1 = arith.constant 0 : i32
    return %arg0, %c0_i32, %c0_i32_0 : i32, i32, i32
  }
  func.func @transform_2(%arg0: i32) -> (i32, i32) {
    %c0_i32 = arith.constant 0 : i32
    %c0_i32_0 = arith.constant 0 : i32
    %c0_i32_1 = arith.constant 0 : i32
    return %c0_i32, %c0_i32_0 : i32, i32
  }
  func.func @transform_3(%arg0: i32) -> (i32, i32) {
    %c0_i32 = arith.constant 0 : i32
    %c0_i32_0 = arith.constant 0 : i32
    %c0_i32_1 = arith.constant 0 : i32
    return %c0_i32, %c0_i32_0 : i32, i32
  }
  func.func @transform_4(%arg0: i32) -> (i32, i32) {
    %c0_i32 = arith.constant 0 : i32
    %c0_i32_0 = arith.constant 0 : i32
    %c0_i32_1 = arith.constant 0 : i32
    return %c0_i32, %c0_i32_0 : i32, i32
  }
  func.func @transform_5(%arg0: i32) -> (i32, i32) {
    %c0_i32 = arith.constant 0 : i32
    %c0_i32_0 = arith.constant 0 : i32
    %c0_i32_1 = arith.constant 0 : i32
    return %c0_i32, %c0_i32_0 : i32, i32
  }
  func.func @transform_6(%arg0: i32) -> (i32, i32) {
    %c0_i32 = arith.constant 0 : i32
    %c0_i32_0 = arith.constant 0 : i32
    %c0_i32_1 = arith.constant 0 : i32
    return %c0_i32, %c0_i32_0 : i32, i32
  }
  func.func @transform_7(%arg0: i32) -> (i32, i32) {
    %c0_i32 = arith.constant 0 : i32
    %c0_i32_0 = arith.constant 0 : i32
    %c0_i32_1 = arith.constant 0 : i32
    return %c0_i32, %c0_i32_0 : i32, i32
  }
  func.func @transform_8(%arg0: i32) -> (i32, i32) {
    %c0_i32 = arith.constant 0 : i32
    %c0_i32_0 = arith.constant 0 : i32
    %c0_i32_1 = arith.constant 0 : i32
    return %c0_i32, %c0_i32_0 : i32, i32
  }
  func.func @transform_9(%arg0: i32) -> (i32, i32) {
    %c0_i32 = arith.constant 0 : i32
    %c0_i32_0 = arith.constant 0 : i32
    %c0_i32_1 = arith.constant 0 : i32
    return %c0_i32, %c0_i32_0 : i32, i32
  }
  func.func @transform_10(%arg0: i32) -> (i32, i32) {
    %c0_i32 = arith.constant 0 : i32
    %c0_i32_0 = arith.constant 0 : i32
    %c0_i32_1 = arith.constant 0 : i32
    return %c0_i32, %c0_i32_0 : i32, i32
  }
  func.func @transform_11(%arg0: i32) -> (i32, i32) {
    %c0_i32 = arith.constant 0 : i32
    %c0_i32_0 = arith.constant 0 : i32
    %c0_i32_1 = arith.constant 0 : i32
    return %c0_i32, %c0_i32_0 : i32, i32
  }
  func.func @transform_12(%arg0: i32) -> (i32, i32) {
    %c0_i32 = arith.constant 0 : i32
    %c0_i32_0 = arith.constant 0 : i32
    %c0_i32_1 = arith.constant 0 : i32
    return %c0_i32, %c0_i32_0 : i32, i32
  }
  func.func @transform_13(%arg0: i32) -> (i32, i32) {
    %c0_i32 = arith.constant 0 : i32
    %c0_i32_0 = arith.constant 0 : i32
    %c0_i32_1 = arith.constant 0 : i32
    return %c0_i32, %c0_i32_0 : i32, i32
  }
  func.func @transform_14(%arg0: i32) -> (i32, i32, i32) {
    %c0_i32 = arith.constant 0 : i32
    %c0_i32_0 = arith.constant 0 : i32
    %c0_i32_1 = arith.constant 0 : i32
    return %arg0, %c0_i32, %c0_i32_0 : i32, i32, i32
  }
}

</mosaic_0001>

<llo_original>
// kernel: esa_forward.3
$region0: #{esa_forward.3}
  #allocation0 [shape = 'u32[]', space=smem, size = 0x4, offset = 0x4, fixed_abs, tag = 'smem constant byte address 0x4 - core index']
  #allocation1 [shape = 'u32[144,128]{1,0:T(1,128)}', space=vmem, size = 0x12000, scoped, tag = 'internal scratch']
  %s0 = inlined_call_operand.vmem [shape: bf16[2,16,576], index: 0, kind: input, shape index: {}]
  %s1 = inlined_call_operand.vmem [shape: bf16[4,16], index: 1, kind: input, shape index: {}]
  %s2 = inlined_call_operand.vmem [shape: f32[4,1], index: 2, kind: input, shape index: {}]
  %s3 = inlined_call_operand.vmem [shape: bf16[2,4,576], index: 3, kind: output, shape index: {}]
  %s4 = sld [smem:[#allocation0]]
  $region45: #{esa_forward.3} parent=0
    _
  %s6 = ssub.s32 1, %s4
  %s7 = scalar_select 0, %s6, %s4
  loop: start=0, step=1, limit=4
  $region2: #{esa_forward.3} parent=0 // loop_pre_header
    _
  $region3: #{esa_forward.3} parent=0 // loop_header
    %s9 = sphi 0, %s13
    %p10 = scmp.ge.s32.totalorder %s9, 4
    %s19 = sphi 0, %s21
    %s22 = sphi 0, %s19
    %s23 = sphi 0, %s22
    %s39 = sphi 0, %s23
    %s43 = sphi 0, %s43
    %s45 = sphi 0, %s43
    %s46 = sphi 0, %s45
    %s60 = sphi 0, %s46
    %s64 = sphi 0, %s64
    %s66 = sphi 0, %s64
    %s67 = sphi 0, %s66
    %s81 = sphi 0, %s67
    %s87 = sphi 0, %s89
    %s90 = sphi 0, %s87
    %s91 = sphi 0, %s90
    %s107 = sphi 0, %s91
  $region4: #{esa_forward.3} parent=0 // loop_header_branch
    %12 = sbr.rel (%p10) target = $region8
  $region5: #{esa_forward.3} parent=0 // loop_body
    %s14 = ssub.s32 %s9, 1
    %s15 = ssub.s32 %s9, 2
    %s16 = sadd.s32 %s9, 1
    %s17 = ssub.s32 %s9, %s16
    %p18 = scmp.eq.s32.totalorder %s17, 0
    %s20 = sadd.s32 %s19, 1
    %s21 = scalar_select %p18, %s19, %s20
    %p24 = pneg %p18
    %p25 = scmp.eq.s32.totalorder %s9, 1
    %p26 = por %p24, %p25
    %p27 = scmp.ne.s32.totalorder %s19, %s22
    %p28 = scmp.eq.s32.totalorder %s9, 0
    %p29 = por %p27, %p28
    %p30 = scmp.ne.s32.totalorder %s19, %s22
    %p31 = scmp.eq.s32.totalorder %s14, 1
    %p32 = por %p30, %p31
    %p33 = scmp.ne.s32.totalorder %s22, %s23
    %p34 = scmp.eq.s32.totalorder %s14, 0
    %p35 = por %p33, %p34
    %p36 = scmp.ne.s32.totalorder %s22, %s23
    %p37 = scmp.eq.s32.totalorder %s15, 1
    %p38 = por %p36, %p37
    %p40 = scmp.ne.s32.totalorder %s23, %s39
    %p41 = scmp.eq.s32.totalorder %s15, 0
    %p42 = por %p40, %p41
    %s44 = sadd.s32 %s43, 1
    %p47 = scmp.eq.s32.totalorder %s9, 1
    %p48 = scmp.ne.s32.totalorder %s43, %s45
    %p49 = scmp.eq.s32.totalorder %s9, 0
    %p50 = por %p48, %p49
    %p51 = scmp.ne.s32.totalorder %s43, %s45
    %p52 = scmp.eq.s32.totalorder %s14, 1
    %p53 = por %p51, %p52
    %p54 = scmp.ne.s32.totalorder %s45, %s46
    %p55 = scmp.eq.s32.totalorder %s14, 0
    %p56 = por %p54, %p55
    %p57 = scmp.ne.s32.totalorder %s45, %s46
    %p58 = scmp.eq.s32.totalorder %s15, 1
    %p59 = por %p57, %p58
    %p61 = scmp.ne.s32.totalorder %s46, %s60
    %p62 = scmp.eq.s32.totalorder %s15, 0
    %p63 = por %p61, %p62
    %s65 = sadd.s32 %s64, 1
    %p68 = scmp.eq.s32.totalorder %s9, 1
    %p69 = scmp.ne.s32.totalorder %s64, %s66
    %p70 = scmp.eq.s32.totalorder %s9, 0
    %p71 = por %p69, %p70
    %p72 = scmp.ne.s32.totalorder %s64, %s66
    %p73 = scmp.eq.s32.totalorder %s14, 1
    %p74 = por %p72, %p73
    %p75 = scmp.ne.s32.totalorder %s66, %s67
    %p76 = scmp.eq.s32.totalorder %s14, 0
    %p77 = por %p75, %p76
    %p78 = scmp.ne.s32.totalorder %s66, %s67
    %p79 = scmp.eq.s32.totalorder %s15, 1
    %p80 = por %p78, %p79
    %p82 = scmp.ne.s32.totalorder %s67, %s81
    %p83 = scmp.eq.s32.totalorder %s15, 0
    %p84 = por %p82, %p83
    %s85 = ssub.s32 %s9, %s16
    %p86 = scmp.eq.s32.totalorder %s85, 0
    %s88 = sadd.s32 %s87, 1
    %s89 = scalar_select %p86, %s87, %s88
    %p92 = pneg %p86
    %p93 = scmp.eq.s32.totalorder %s9, 1
    %p94 = por %p92, %p93
    %p95 = scmp.ne.s32.totalorder %s87, %s90
    %p96 = scmp.eq.s32.totalorder %s9, 0
    %p97 = por %p95, %p96
    %p98 = scmp.ne.s32.totalorder %s87, %s90
    %p99 = scmp.eq.s32.totalorder %s14, 1
    %p100 = por %p98, %p99
    %p101 = scmp.ne.s32.totalorder %s90, %s91
    %p102 = scmp.eq.s32.totalorder %s14, 0
    %p103 = por %p101, %p102
    %p104 = scmp.ne.s32.totalorder %s90, %s91
    %p105 = scmp.eq.s32.totalorder %s15, 1
    %p106 = por %p104, %p105
    %p108 = scmp.ne.s32.totalorder %s91, %s107
    %p109 = scmp.eq.s32.totalorder %s15, 0
    %p110 = por %p108, %p109
    %p111 = scmp.le.s32.totalorder 1, %s9
    %p112 = scmp.lt.s32.totalorder %s9, 3
    %p113 = pnand %p111, %p112
    %p114 = pneg %p113
    // Predicated region
    $region9: #{esa_forward.3} parent=5 // pred_check
      _
    $region10: #{esa_forward.3} parent=5 // pred_check_branch
      %116 = sbr.rel (%p113) target = $region12
    $region11: #{esa_forward.3} parent=5 // pred_region
      %s117 = ssub.s32 %s9, 1
      // Predicated region
      $region13: #{esa_forward.3} parent=11 // pred_check
        %p118 = pneg %p56
      $region14: #{esa_forward.3} parent=11 // pred_check_branch
        %120 = sbr.rel (%p118) target = $region16
      $region15: #{esa_forward.3} parent=11 // pred_region
        _
      $region16: #{esa_forward.3} parent=11 // pred_fallthru
        _
      // Predicated region
      $region17: #{esa_forward.3} parent=11 // pred_check
        %p121 = pneg %p77
      $region18: #{esa_forward.3} parent=11 // pred_check_branch
        %123 = sbr.rel (%p121) target = $region20
      $region19: #{esa_forward.3} parent=11 // pred_region
        _
      $region20: #{esa_forward.3} parent=11 // pred_fallthru
        _
    $region12: #{esa_forward.3} parent=5 // pred_fallthru
      _
    %p124 = scmp.lt.s32.totalorder %s9, 2
    // Predicated region
    $region21: #{esa_forward.3} parent=5 // pred_check
      %p125 = pneg %p124
    $region22: #{esa_forward.3} parent=5 // pred_check_branch
      %127 = sbr.rel (%p125) target = $region24
    $region23: #{esa_forward.3} parent=5 // pred_region
      // Predicated region
      $region25: #{esa_forward.3} parent=23 // pred_check
        %p128 = pneg %p29
      $region26: #{esa_forward.3} parent=23 // pred_check_branch
        %130 = sbr.rel (%p128) target = $region28
      $region27: #{esa_forward.3} parent=23 // pred_region
        %p131 = scmp.lt.s32.totalorder %s9, 1
        %s132 = scalar_select %p131, %s9, 1
        %s133 = smul.addr %s132, 10
        %s134 = smul.addr %s133, 4
        %s135 = scalar_lea.vmem %s0, %s134
      $region28: #{esa_forward.3} parent=23 // pred_fallthru
        _
    $region24: #{esa_forward.3} parent=5 // pred_fallthru
      _
    %p136 = scmp.le.s32.totalorder 1, %s9
    %p137 = scmp.lt.s32.totalorder %s9, 3
    %p138 = pnand %p136, %p137
    %p139 = pneg %p138
    // Predicated region
    $region29: #{esa_forward.3} parent=5 // pred_check
      _
    $region30: #{esa_forward.3} parent=5 // pred_check_branch
      %141 = sbr.rel (%p138) target = $region32
    $region31: #{esa_forward.3} parent=5 // pred_region
      %s142 = ssub.s32 %s9, 1
      %p143 = scmp.lt.s32.totalorder %s14, 1
      %s144 = scalar_select %p143, %s14, 1
      %s145 = smul.addr %s144, 10
      %s146 = smul.addr %s145, 4
      %s147 = scalar_lea.vmem %s0, %s146
      %p148 = pneg %p35
      %p149 = pneg %p32
      %p150 = pneg %p56
      %p151 = pneg %p53
      %p152 = pneg %p77
      %p153 = pneg %p74
      %p154 = pneg %p103
      %p155 = pneg %p100
      %p156 = scmp.lt.s32.totalorder %s14, 1
      %s157 = scalar_select %p156, %s14, 1
      %s158 = smul.addr %s157, 5
      %s159 = smul.addr %s158, 2
      %s160 = scalar_lea.vmem %s3, %s159
      %p161 = scmp.lt.s32.totalorder %s14, 1
      %s162 = scalar_select %p161, %s14, 1
      %s163 = smul.addr %s162, 10
      %s164 = smul.addr %s163, 4
      %s165 = scalar_lea.vmem %s0, %s164
      %p166 = scmp.lt.s32.totalorder %s14, 1
      %s167 = scalar_select %p166, %s14, 1
      %s168 = smul.addr %s167, 5
      %s169 = smul.addr %s168, 2
      %s170 = scalar_lea.vmem %s3, %s169
      %v172 = vld [vmem:[%s1] sm:$0x3]
      %v173 = vld [vmem:[%s165] sm:$0xff]
      %v174 = vld [vmem:[%s165 + $0x8] sm:$0xff]
      %v175 = vld [vmem:[%s165 + $0x10] sm:$0xf]
      %v176 = vld [vmem:[%s165 + $0x14] sm:$0xff]
      %v177 = vld [vmem:[%s165 + $0x1c] sm:$0xff]
      %v178 = vld [vmem:[%s165 + $0x24] sm:$0xf]
      %v179 = vld [vmem:[%s2] sm:$0xf]
      %181 = vset.pattern.permute.xlu0 0
      %182 = vperm.xlu0 %181, %v179
      %v183 = vpop.permute.xlu0 %182
      %v191 = vunpack.c.l.b16 %v173
      %v192 = vunpack.c.h.b16 %v173
      %v193 = vunpack.c.l.b16 %v174
      %v194 = vunpack.c.h.b16 %v174
      %v195 = vunpack.c.l.b16 %v175
      %v196 = vunpack.c.l.b16 %v176
      %v197 = vunpack.c.h.b16 %v176
      %v198 = vunpack.c.l.b16 %v177
      %v199 = vunpack.c.h.b16 %v177
      %v200 = vunpack.c.l.b16 %v178
      %v201 = vpack.c.b16 %v196, %v191
      %v202 = vpack.c.b16 %v197, %v192
      %v203 = vpack.c.b16 %v198, %v193
      %v204 = vpack.c.b16 %v199, %v194
      %v205 = vpack.c.b16 %v200, %v195
      %vm211 = vcmask 130048
      %v213 = vsel %vm211, %v172, 0
      %215 = vmatprep.subr.bf16.mxu0 %v202
      %216 = vmatpush1.bf16.msra.mxu0 %v201
      %217 = vmatprep.subr.bf16.mxu0 0
      %218 = vmatpush1.bf16.msra.mxu0 0
      %219 = vmatprep.subr.bf16.mxu0 0
      %220 = vmatpush1.bf16.msra.mxu0 0
      %221 = vmatprep.subr.bf16.mxu0 0
      %222 = vmatpush1.bf16.msra.mxu0 0
      %223 = vmatprep.subr.bf16.mxu0 0
      %224 = vmatpush1.bf16.msra.mxu0 0
      %225 = vmatprep.subr.bf16.mxu0 0
      %226 = vmatpush1.bf16.msra.mxu0 0
      %227 = vmatprep.subr.bf16.mxu0 0
      %228 = vmatpush1.bf16.msra.mxu0 0
      %229 = vmatprep.subr.bf16.mxu0 0
      %230 = vmatpush1.bf16.msra.mxu0 0
      %231 = vmatprep.subr.bf16.mxu0 0
      %232 = vmatpush1.bf16.msra.mxu0 0
      %233 = vmatprep.subr.bf16.mxu0 0
      %234 = vmatpush1.bf16.msra.mxu0 0
      %235 = vmatprep.subr.bf16.mxu0 0
      %236 = vmatpush1.bf16.msra.mxu0 0
      %237 = vmatprep.subr.bf16.mxu0 0
      %238 = vmatpush1.bf16.msra.mxu0 0
      %239 = vmatprep.subr.bf16.mxu0 0
      %240 = vmatpush1.bf16.msra.mxu0 0
      %241 = vmatprep.subr.bf16.mxu0 0
      %242 = vmatpush1.bf16.msra.mxu0 0
      %243 = vmatprep.subr.bf16.mxu0 0
      %244 = vmatpush1.bf16.msra.mxu0 0
      %245 = vmatprep.subr.bf16.mxu0 0
      %246 = vmatpush1.bf16.msra.mxu0 0
      %247 = vmatprep.mubr.bf16.mxu0 0
      %248 = vmatmul.mubr.bf16.gmra.mrb[0].mxu0 %v213
      %v249 = vpop.f32.mrb[0].mxu0
      %v250 = vadd.f32 %v183, %v249
      %v251 = vpop.f32.mrb[0].mxu0
      %v252 = vadd.f32 %v183, %v251
      %v253 = vpop.f32.mrb[0].mxu0
      %v254 = vpop.f32.mrb[0].mxu0
      %255 = vdwg.mxu0
      %256 = vmatprep.subr.bf16.mxu0 %v204
      %257 = vmatpush1.bf16.msra.mxu0 %v203
      %258 = vmatprep.subr.bf16.mxu0 0
      %259 = vmatpush1.bf16.msra.mxu0 0
      %260 = vmatprep.subr.bf16.mxu0 0
      %261 = vmatpush1.bf16.msra.mxu0 0
      %262 = vmatprep.subr.bf16.mxu0 0
      %263 = vmatpush1.bf16.msra.mxu0 0
      %264 = vmatprep.subr.bf16.mxu0 0
      %265 = vmatpush1.bf16.msra.mxu0 0
      %266 = vmatprep.subr.bf16.mxu0 0
      %267 = vmatpush1.bf16.msra.mxu0 0
      %268 = vmatprep.subr.bf16.mxu0 0
      %269 = vmatpush1.bf16.msra.mxu0 0
      %270 = vmatprep.subr.bf16.mxu0 0
      %271 = vmatpush1.bf16.msra.mxu0 0
      %272 = vmatprep.subr.bf16.mxu0 0
      %273 = vmatpush1.bf16.msra.mxu0 0
      %274 = vmatprep.subr.bf16.mxu0 0
      %275 = vmatpush1.bf16.msra.mxu0 0
      %276 = vmatprep.subr.bf16.mxu0 0
      %277 = vmatpush1.bf16.msra.mxu0 0
      %278 = vmatprep.subr.bf16.mxu0 0
      %279 = vmatpush1.bf16.msra.mxu0 0
      %280 = vmatprep.subr.bf16.mxu0 0
      %281 = vmatpush1.bf16.msra.mxu0 0
      %282 = vmatprep.subr.bf16.mxu0 0
      %283 = vmatpush1.bf16.msra.mxu0 0
      %284 = vmatprep.subr.bf16.mxu0 0
      %285 = vmatpush1.bf16.msra.mxu0 0
      %286 = vmatprep.subr.bf16.mxu0 0
      %287 = vmatpush1.bf16.msra.mxu0 0
      %288 = vmatprep.mubr.bf16.mxu0 0
      %289 = vmatmul.mubr.bf16.gmra.mrb[0].mxu0 %v213
      %v290 = vpop.f32.mrb[0].mxu0
      %v291 = vadd.f32 %v183, %v290
      %v292 = vpop.f32.mrb[0].mxu0
      %v293 = vadd.f32 %v183, %v292
      %v294 = vpop.f32.mrb[0].mxu0
      %v295 = vpop.f32.mrb[0].mxu0
      %296 = vdwg.mxu0
      %297 = vmatprep.subr.bf16.mxu0 0
      %298 = vmatpush1.bf16.msra.mxu0 %v205
      %299 = vmatprep.subr.bf16.mxu0 0
      %300 = vmatpush1.bf16.msra.mxu0 0
      %301 = vmatprep.subr.bf16.mxu0 0
      %302 = vmatpush1.bf16.msra.mxu0 0
      %303 = vmatprep.subr.bf16.mxu0 0
      %304 = vmatpush1.bf16.msra.mxu0 0
      %305 = vmatprep.subr.bf16.mxu0 0
      %306 = vmatpush1.bf16.msra.mxu0 0
      %307 = vmatprep.subr.bf16.mxu0 0
      %308 = vmatpush1.bf16.msra.mxu0 0
      %309 = vmatprep.subr.bf16.mxu0 0
      %310 = vmatpush1.bf16.msra.mxu0 0
      %311 = vmatprep.subr.bf16.mxu0 0
      %312 = vmatpush1.bf16.msra.mxu0 0
      %313 = vmatprep.subr.bf16.mxu0 0
      %314 = vmatpush1.bf16.msra.mxu0 0
      %315 = vmatprep.subr.bf16.mxu0 0
      %316 = vmatpush1.bf16.msra.mxu0 0
      %317 = vmatprep.subr.bf16.mxu0 0
      %318 = vmatpush1.bf16.msra.mxu0 0
      %319 = vmatprep.subr.bf16.mxu0 0
      %320 = vmatpush1.bf16.msra.mxu0 0
      %321 = vmatprep.subr.bf16.mxu0 0
      %322 = vmatpush1.bf16.msra.mxu0 0
      %323 = vmatprep.subr.bf16.mxu0 0
      %324 = vmatpush1.bf16.msra.mxu0 0
      %325 = vmatprep.subr.bf16.mxu0 0
      %326 = vmatpush1.bf16.msra.mxu0 0
      %327 = vmatprep.subr.bf16.mxu0 0
      %328 = vmatpush1.bf16.msra.mxu0 0
      %329 = vmatprep.mubr.bf16.mxu0 0
      %330 = vmatmul.mubr.bf16.gmra.mrb[0].mxu0 %v213
      %v331 = vpop.f32.mrb[0].mxu0
      %v332 = vadd.f32 %v183, %v331
      %v333 = vpop.f32.mrb[0].mxu0
      %v334 = vpop.f32.mrb[0].mxu0
      %v335 = vpop.f32.mrb[0].mxu0
      %336 = vdwg.mxu0
      %v337 = vmax.f32 %v250, 0.0
      %v338 = vmax.f32 %v252, 0.0
      %v339 = vmax.f32 %v291, 0.0
      %v340 = vmax.f32 %v293, 0.0
      %v341 = vmax.f32 %v332, 0.0
      %v342 = vpack.c.bf16 %v337, %v337
      %v343 = vpack.c.bf16 %v338, %v338
      %v344 = vpack.c.bf16 %v339, %v339
      %v345 = vpack.c.bf16 %v340, %v340
      %v346 = vpack.c.bf16 %v341, %v341
      %v352 = vcombine.low %v342, %v343
      %v353 = vcombine.low %v344, %v345
      %v355 = vunpack.c.l.s4 1983009808
      %v356 = vunpack.c.0.s8 %v355
      %v357 = vlaneseq
      %v358 = vshrl.u32 %v357, 7
      %v359 = vsub.s32 %v356, %v358
      %v360 = vrot.slane %v352, %v359
      %v362 = vunpack.c.l.s4 1983009808
      %v363 = vunpack.c.0.s8 %v362
      %v364 = vlaneseq
      %v365 = vshrl.u32 %v364, 7
      %v366 = vsub.s32 %v363, %v365
      %v367 = vrot.slane %v353, %v366
      %v368 = vcombine.low %v360, %v367
      %v370 = vunpack.c.l.s4 1983009808
      %v371 = vunpack.c.0.s8 %v370
      %v372 = vlaneseq
      %v373 = vshrl.u32 %v372, 7
      %v374 = vsub.s32 %v371, %v373
      %v375 = vrot.slane %v346, %v374
      %378 = vst [vmem:[%s170] sm:$0xff] %v368
      %vm379 = vcmask 517120
      %380 = vst.msk [vmem:[%s170 + $0x8] sm:$0x3] %vm379, %v375
      %p381 = scmp.lt.s32.totalorder %s14, 1
      %s382 = scalar_select %p381, %s14, 1
      %s383 = smul.addr %s382, 5
      %s384 = smul.addr %s383, 2
      %s385 = scalar_lea.vmem %s3, %s384
      // Predicated region
      $region33: #{esa_forward.3} parent=31 // pred_check
        %p386 = pneg %p100
      $region34: #{esa_forward.3} parent=31 // pred_check_branch
        %388 = sbr.rel (%p386) target = $region36
      $region35: #{esa_forward.3} parent=31 // pred_region
        _
      $region36: #{esa_forward.3} parent=31 // pred_fallthru
        _
    $region32: #{esa_forward.3} parent=5 // pred_fallthru
      _
    %p389 = scmp.le.s32.totalorder 2, %s9
    // Predicated region
    $region37: #{esa_forward.3} parent=5 // pred_check
      %p390 = pneg %p389
    $region38: #{esa_forward.3} parent=5 // pred_check_branch
      %392 = sbr.rel (%p390) target = $region40
    $region39: #{esa_forward.3} parent=5 // pred_region
      %s393 = ssub.s32 %s9, 2
      // Predicated region
      $region41: #{esa_forward.3} parent=39 // pred_check
        %p394 = pneg %p106
      $region42: #{esa_forward.3} parent=39 // pred_check_branch
        %396 = sbr.rel (%p394) target = $region44
      $region43: #{esa_forward.3} parent=39 // pred_region
        %p397 = scmp.lt.s32.totalorder %s15, 1
        %s398 = scalar_select %p397, %s15, 1
        %s399 = smul.addr %s398, 5
        %s400 = smul.addr %s399, 2
        %s401 = scalar_lea.vmem %s3, %s400
      $region44: #{esa_forward.3} parent=39 // pred_fallthru
        _
    $region40: #{esa_forward.3} parent=5 // pred_fallthru
      _
  $region6: #{esa_forward.3} parent=0 // loop_footer
    %s13 = sadd.s32 1, %s9
  $region7: #{esa_forward.3} parent=0 // loop_footer_branch
    %8 = sbr.rel target = $region3
  $region8: #{esa_forward.3} parent=0 // loop_exit
    _

// kernel: esa_forward.4
$region0: #{esa_forward.4}
  #allocation0 [shape = 'u32[]', space=smem, size = 0x4, offset = 0x4, fixed_abs, tag = 'smem constant byte address 0x4 - core index']
  #allocation1 [shape = 'u32[144,128]{1,0:T(1,128)}', space=vmem, size = 0x12000, scoped, tag = 'internal scratch']
  %s0 = inlined_call_operand.vmem [shape: bf16[2,36,128], index: 0, kind: input, shape index: {}]
  %s1 = inlined_call_operand.vmem [shape: bf16[4,36], index: 1, kind: input, shape index: {}]
  %s2 = inlined_call_operand.vmem [shape: f32[4,1], index: 2, kind: input, shape index: {}]
  %s3 = inlined_call_operand.vmem [shape: f32[2,4,128], index: 3, kind: output, shape index: {}]
  %s4 = sld [smem:[#allocation0]]
  $region45: #{esa_forward.4} parent=0
    _
  %s6 = ssub.s32 1, %s4
  %s7 = scalar_select 0, %s6, %s4
  loop: start=0, step=1, limit=4
  $region2: #{esa_forward.4} parent=0 // loop_pre_header
    _
  $region3: #{esa_forward.4} parent=0 // loop_header
    %s9 = sphi 0, %s13
    %p10 = scmp.ge.s32.totalorder %s9, 4
    %s19 = sphi 0, %s21
    %s22 = sphi 0, %s19
    %s23 = sphi 0, %s22
    %s39 = sphi 0, %s23
    %s43 = sphi 0, %s43
    %s45 = sphi 0, %s43
    %s46 = sphi 0, %s45
    %s60 = sphi 0, %s46
    %s64 = sphi 0, %s64
    %s66 = sphi 0, %s64
    %s67 = sphi 0, %s66
    %s81 = sphi 0, %s67
    %s87 = sphi 0, %s89
    %s90 = sphi 0, %s87
    %s91 = sphi 0, %s90
    %s107 = sphi 0, %s91
  $region4: #{esa_forward.4} parent=0 // loop_header_branch
    %12 = sbr.rel (%p10) target = $region8
  $region5: #{esa_forward.4} parent=0 // loop_body
    %s14 = ssub.s32 %s9, 1
    %s15 = ssub.s32 %s9, 2
    %s16 = sadd.s32 %s9, 1
    %s17 = ssub.s32 %s9, %s16
    %p18 = scmp.eq.s32.totalorder %s17, 0
    %s20 = sadd.s32 %s19, 1
    %s21 = scalar_select %p18, %s19, %s20
    %p24 = pneg %p18
    %p25 = scmp.eq.s32.totalorder %s9, 1
    %p26 = por %p24, %p25
    %p27 = scmp.ne.s32.totalorder %s19, %s22
    %p28 = scmp.eq.s32.totalorder %s9, 0
    %p29 = por %p27, %p28
    %p30 = scmp.ne.s32.totalorder %s19, %s22
    %p31 = scmp.eq.s32.totalorder %s14, 1
    %p32 = por %p30, %p31
    %p33 = scmp.ne.s32.totalorder %s22, %s23
    %p34 = scmp.eq.s32.totalorder %s14, 0
    %p35 = por %p33, %p34
    %p36 = scmp.ne.s32.totalorder %s22, %s23
    %p37 = scmp.eq.s32.totalorder %s15, 1
    %p38 = por %p36, %p37
    %p40 = scmp.ne.s32.totalorder %s23, %s39
    %p41 = scmp.eq.s32.totalorder %s15, 0
    %p42 = por %p40, %p41
    %s44 = sadd.s32 %s43, 1
    %p47 = scmp.eq.s32.totalorder %s9, 1
    %p48 = scmp.ne.s32.totalorder %s43, %s45
    %p49 = scmp.eq.s32.totalorder %s9, 0
    %p50 = por %p48, %p49
    %p51 = scmp.ne.s32.totalorder %s43, %s45
    %p52 = scmp.eq.s32.totalorder %s14, 1
    %p53 = por %p51, %p52
    %p54 = scmp.ne.s32.totalorder %s45, %s46
    %p55 = scmp.eq.s32.totalorder %s14, 0
    %p56 = por %p54, %p55
    %p57 = scmp.ne.s32.totalorder %s45, %s46
    %p58 = scmp.eq.s32.totalorder %s15, 1
    %p59 = por %p57, %p58
    %p61 = scmp.ne.s32.totalorder %s46, %s60
    %p62 = scmp.eq.s32.totalorder %s15, 0
    %p63 = por %p61, %p62
    %s65 = sadd.s32 %s64, 1
    %p68 = scmp.eq.s32.totalorder %s9, 1
    %p69 = scmp.ne.s32.totalorder %s64, %s66
    %p70 = scmp.eq.s32.totalorder %s9, 0
    %p71 = por %p69, %p70
    %p72 = scmp.ne.s32.totalorder %s64, %s66
    %p73 = scmp.eq.s32.totalorder %s14, 1
    %p74 = por %p72, %p73
    %p75 = scmp.ne.s32.totalorder %s66, %s67
    %p76 = scmp.eq.s32.totalorder %s14, 0
    %p77 = por %p75, %p76
    %p78 = scmp.ne.s32.totalorder %s66, %s67
    %p79 = scmp.eq.s32.totalorder %s15, 1
    %p80 = por %p78, %p79
    %p82 = scmp.ne.s32.totalorder %s67, %s81
    %p83 = scmp.eq.s32.totalorder %s15, 0
    %p84 = por %p82, %p83
    %s85 = ssub.s32 %s9, %s16
    %p86 = scmp.eq.s32.totalorder %s85, 0
    %s88 = sadd.s32 %s87, 1
    %s89 = scalar_select %p86, %s87, %s88
    %p92 = pneg %p86
    %p93 = scmp.eq.s32.totalorder %s9, 1
    %p94 = por %p92, %p93
    %p95 = scmp.ne.s32.totalorder %s87, %s90
    %p96 = scmp.eq.s32.totalorder %s9, 0
    %p97 = por %p95, %p96
    %p98 = scmp.ne.s32.totalorder %s87, %s90
    %p99 = scmp.eq.s32.totalorder %s14, 1
    %p100 = por %p98, %p99
    %p101 = scmp.ne.s32.totalorder %s90, %s91
    %p102 = scmp.eq.s32.totalorder %s14, 0
    %p103 = por %p101, %p102
    %p104 = scmp.ne.s32.totalorder %s90, %s91
    %p105 = scmp.eq.s32.totalorder %s15, 1
    %p106 = por %p104, %p105
    %p108 = scmp.ne.s32.totalorder %s91, %s107
    %p109 = scmp.eq.s32.totalorder %s15, 0
    %p110 = por %p108, %p109
    %p111 = scmp.le.s32.totalorder 1, %s9
    %p112 = scmp.lt.s32.totalorder %s9, 3
    %p113 = pnand %p111, %p112
    %p114 = pneg %p113
    // Predicated region
    $region9: #{esa_forward.4} parent=5 // pred_check
      _
    $region10: #{esa_forward.4} parent=5 // pred_check_branch
      %116 = sbr.rel (%p113) target = $region12
    $region11: #{esa_forward.4} parent=5 // pred_region
      %s117 = ssub.s32 %s9, 1
      // Predicated region
      $region13: #{esa_forward.4} parent=11 // pred_check
        %p118 = pneg %p56
      $region14: #{esa_forward.4} parent=11 // pred_check_branch
        %120 = sbr.rel (%p118) target = $region16
      $region15: #{esa_forward.4} parent=11 // pred_region
        _
      $region16: #{esa_forward.4} parent=11 // pred_fallthru
        _
      // Predicated region
      $region17: #{esa_forward.4} parent=11 // pred_check
        %p121 = pneg %p77
      $region18: #{esa_forward.4} parent=11 // pred_check_branch
        %123 = sbr.rel (%p121) target = $region20
      $region19: #{esa_forward.4} parent=11 // pred_region
        _
      $region20: #{esa_forward.4} parent=11 // pred_fallthru
        _
    $region12: #{esa_forward.4} parent=5 // pred_fallthru
      _
    %p124 = scmp.lt.s32.totalorder %s9, 2
    // Predicated region
    $region21: #{esa_forward.4} parent=5 // pred_check
      %p125 = pneg %p124
    $region22: #{esa_forward.4} parent=5 // pred_check_branch
      %127 = sbr.rel (%p125) target = $region24
    $region23: #{esa_forward.4} parent=5 // pred_region
      // Predicated region
      $region25: #{esa_forward.4} parent=23 // pred_check
        %p128 = pneg %p29
      $region26: #{esa_forward.4} parent=23 // pred_check_branch
        %130 = sbr.rel (%p128) target = $region28
      $region27: #{esa_forward.4} parent=23 // pred_region
        %p131 = scmp.lt.s32.totalorder %s9, 1
        %s132 = scalar_select %p131, %s9, 1
        %s133 = smul.addr %s132, 5
        %s134 = smul.addr %s133, 4
        %s135 = scalar_lea.vmem %s0, %s134
      $region28: #{esa_forward.4} parent=23 // pred_fallthru
        _
    $region24: #{esa_forward.4} parent=5 // pred_fallthru
      _
    %p136 = scmp.le.s32.totalorder 1, %s9
    %p137 = scmp.lt.s32.totalorder %s9, 3
    %p138 = pnand %p136, %p137
    %p139 = pneg %p138
    // Predicated region
    $region29: #{esa_forward.4} parent=5 // pred_check
      _
    $region30: #{esa_forward.4} parent=5 // pred_check_branch
      %141 = sbr.rel (%p138) target = $region32
    $region31: #{esa_forward.4} parent=5 // pred_region
      %s142 = ssub.s32 %s9, 1
      %p143 = scmp.lt.s32.totalorder %s14, 1
      %s144 = scalar_select %p143, %s14, 1
      %s145 = smul.addr %s144, 5
      %s146 = smul.addr %s145, 4
      %s147 = scalar_lea.vmem %s0, %s146
      %p148 = pneg %p35
      %p149 = pneg %p32
      %p150 = pneg %p56
      %p151 = pneg %p53
      %p152 = pneg %p77
      %p153 = pneg %p74
      %p154 = pneg %p103
      %p155 = pneg %p100
      %p156 = scmp.lt.s32.totalorder %s14, 1
      %s157 = scalar_select %p156, %s14, 1
      %s158 = smul.addr %s157, 4
      %s159 = scalar_lea.vmem %s3, %s158
      %p160 = scmp.lt.s32.totalorder %s14, 1
      %s161 = scalar_select %p160, %s14, 1
      %s162 = smul.addr %s161, 5
      %s163 = smul.addr %s162, 4
      %s164 = scalar_lea.vmem %s0, %s163
      %p165 = scmp.lt.s32.totalorder %s14, 1
      %s166 = scalar_select %p165, %s14, 1
      %s167 = smul.addr %s166, 4
      %s168 = scalar_lea.vmem %s3, %s167
      %v170 = vld [vmem:[%s1] sm:$0x3]
      %v171 = vld [vmem:[%s164] sm:$0xf]
      %v172 = vld [vmem:[%s164 + $0x4] sm:$0xf]
      %v173 = vld [vmem:[%s164 + $0x8] sm:$0xf]
      %v174 = vld [vmem:[%s164 + $0xc] sm:$0xf]
      %v175 = vld [vmem:[%s164 + $0x10] sm:$0x3]
      %v176 = vld [vmem:[%s2] sm:$0xf]
      %178 = vset.pattern.permute.xlu0 0
      %179 = vperm.xlu0 %178, %v176
      %v180 = vpop.permute.xlu0 %179
      %v187 = vunpack.c.l.b16 %v171
      %v188 = vunpack.c.l.b16 %v172
      %v189 = vunpack.c.l.b16 %v173
      %v190 = vunpack.c.l.b16 %v174
      %v191 = vunpack.c.l.b16 %v175
      %v192 = vpack.c.b16 %v188, %v187
      %v193 = vpack.c.b16 %v190, %v189
      %v194 = vpack.c.b16 %v191, %v191
      %vm197 = vcmask 293888
      %v199 = vsel %vm197, %v170, 0
      %vm201 = vcmask 1041408
      %v203 = vsel %vm201, %v194, 0
      %205 = vmatprep.subr.bf16.mxu0 0
      %206 = vmatpush1.bf16.msra.mxu0 %v192
      %207 = vmatprep.subr.bf16.mxu0 0
      %208 = vmatpush1.bf16.msra.mxu0 %v193
      %209 = vmatprep.subr.bf16.mxu0 0
      %210 = vmatpush1.bf16.msra.mxu0 %v203
      %211 = vmatprep.subr.bf16.mxu0 0
      %212 = vmatpush1.bf16.msra.mxu0 0
      %213 = vmatprep.subr.bf16.mxu0 0
      %214 = vmatpush1.bf16.msra.mxu0 0
      %215 = vmatprep.subr.bf16.mxu0 0
      %216 = vmatpush1.bf16.msra.mxu0 0
      %217 = vmatprep.subr.bf16.mxu0 0
      %218 = vmatpush1.bf16.msra.mxu0 0
      %219 = vmatprep.subr.bf16.mxu0 0
      %220 = vmatpush1.bf16.msra.mxu0 0
      %221 = vmatprep.subr.bf16.mxu0 0
      %222 = vmatpush1.bf16.msra.mxu0 0
      %223 = vmatprep.subr.bf16.mxu0 0
      %224 = vmatpush1.bf16.msra.mxu0 0
      %225 = vmatprep.subr.bf16.mxu0 0
      %226 = vmatpush1.bf16.msra.mxu0 0
      %227 = vmatprep.subr.bf16.mxu0 0
      %228 = vmatpush1.bf16.msra.mxu0 0
      %229 = vmatprep.subr.bf16.mxu0 0
      %230 = vmatpush1.bf16.msra.mxu0 0
      %231 = vmatprep.subr.bf16.mxu0 0
      %232 = vmatpush1.bf16.msra.mxu0 0
      %233 = vmatprep.subr.bf16.mxu0 0
      %234 = vmatpush1.bf16.msra.mxu0 0
      %235 = vmatprep.subr.bf16.mxu0 0
      %236 = vmatpush1.bf16.msra.mxu0 0
      %237 = vmatprep.mubr.bf16.mxu0 0
      %238 = vmatmul.mubr.bf16.gmra.mrb[0].mxu0 %v199
      %v239 = vpop.f32.mrb[0].mxu0
      %v240 = vadd.f32 %v180, %v239
      %v241 = vpop.f32.mrb[0].mxu0
      %v242 = vpop.f32.mrb[0].mxu0
      %v243 = vpop.f32.mrb[0].mxu0
      %244 = vdwg.mxu0
      %v245 = vmax.f32 %v240, 0.0
      %246 = vst [vmem:[%s168] sm:$0xf] %v245
      %p247 = scmp.lt.s32.totalorder %s14, 1
      %s248 = scalar_select %p247, %s14, 1
      %s249 = smul.addr %s248, 4
      %s250 = scalar_lea.vmem %s3, %s249
      // Predicated region
      $region33: #{esa_forward.4} parent=31 // pred_check
        %p251 = pneg %p100
      $region34: #{esa_forward.4} parent=31 // pred_check_branch
        %253 = sbr.rel (%p251) target = $region36
      $region35: #{esa_forward.4} parent=31 // pred_region
        _
      $region36: #{esa_forward.4} parent=31 // pred_fallthru
        _
    $region32: #{esa_forward.4} parent=5 // pred_fallthru
      _
    %p254 = scmp.le.s32.totalorder 2, %s9
    // Predicated region
    $region37: #{esa_forward.4} parent=5 // pred_check
      %p255 = pneg %p254
    $region38: #{esa_forward.4} parent=5 // pred_check_branch
      %257 = sbr.rel (%p255) target = $region40
    $region39: #{esa_forward.4} parent=5 // pred_region
      %s258 = ssub.s32 %s9, 2
      // Predicated region
      $region41: #{esa_forward.4} parent=39 // pred_check
        %p259 = pneg %p106
      $region42: #{esa_forward.4} parent=39 // pred_check_branch
        %261 = sbr.rel (%p259) target = $region44
      $region43: #{esa_forward.4} parent=39 // pred_region
        %p262 = scmp.lt.s32.totalorder %s15, 1
        %s263 = scalar_select %p262, %s15, 1
        %s264 = smul.addr %s263, 4
        %s265 = scalar_lea.vmem %s3, %s264
      $region44: #{esa_forward.4} parent=39 // pred_fallthru
        _
    $region40: #{esa_forward.4} parent=5 // pred_fallthru
      _
  $region6: #{esa_forward.4} parent=0 // loop_footer
    %s13 = sadd.s32 1, %s9
  $region7: #{esa_forward.4} parent=0 // loop_footer_branch
    %8 = sbr.rel target = $region3
  $region8: #{esa_forward.4} parent=0 // loop_exit
    _

// kernel: esa_forward.5
$region0: #{esa_forward.5}
  #allocation0 [shape = 'u32[]', space=smem, size = 0x4, offset = 0x4, fixed_abs, tag = 'smem constant byte address 0x4 - core index']
  #allocation1 [shape = 'u32[144,128]{1,0:T(1,128)}', space=vmem, size = 0x12000, scoped, tag = 'internal scratch']
  %s0 = inlined_call_operand.vmem [shape: f32[2,1,16], index: 0, kind: input, shape index: {}]
  %s1 = inlined_call_operand.vmem [shape: bf16[2,4,576], index: 1, kind: input, shape index: {}]
  %s2 = inlined_call_operand.vmem [shape: f32[4,16], index: 2, kind: input, shape index: {}]
  %s3 = inlined_call_operand.vmem [shape: f32[16,576], index: 3, kind: input, shape index: {}]
  %s4 = inlined_call_operand.vmem [shape: f32[16,16], index: 4, kind: input, shape index: {}]
  %s5 = inlined_call_operand.vmem [shape: f32[1,16], index: 5, kind: input, shape index: {}]
  %s6 = inlined_call_operand.vmem [shape: f32[16,16], index: 6, kind: input, shape index: {}]
  %s7 = inlined_call_operand.vmem [shape: f32[1,16], index: 7, kind: input, shape index: {}]
  %s8 = inlined_call_operand.vmem [shape: f32[16,16], index: 8, kind: input, shape index: {}]
  %s9 = inlined_call_operand.vmem [shape: f32[1,16], index: 9, kind: input, shape index: {}]
  %s10 = inlined_call_operand.vmem [shape: f32[4,4], index: 10, kind: input, shape index: {}]
  %s11 = inlined_call_operand.vmem [shape: f32[4,1], index: 11, kind: input, shape index: {}]
  %s12 = inlined_call_operand.vmem [shape: f32[16,4], index: 12, kind: input, shape index: {}]
  %s13 = inlined_call_operand.vmem [shape: f32[16,1], index: 13, kind: input, shape index: {}]
  %s14 = inlined_call_operand.vmem [shape: f32[2,16,576], index: 14, kind: output, shape index: {}]
  %s15 = sld [smem:[#allocation0]]
  $region89: #{esa_forward.5} parent=0
    _
  %s17 = ssub.s32 1, %s15
  %s18 = scalar_select 0, %s17, %s15
  loop: start=0, step=1, limit=4
  $region2: #{esa_forward.5} parent=0 // loop_pre_header
    _
  $region3: #{esa_forward.5} parent=0 // loop_header
    %s20 = sphi 0, %s24
    %p21 = scmp.ge.s32.totalorder %s20, 4
    %s30 = sphi 0, %s32
    %s33 = sphi 0, %s30
    %s34 = sphi 0, %s33
    %s50 = sphi 0, %s34
    %s56 = sphi 0, %s58
    %s59 = sphi 0, %s56
    %s60 = sphi 0, %s59
    %s76 = sphi 0, %s60
    %s80 = sphi 0, %s80
    %s82 = sphi 0, %s80
    %s83 = sphi 0, %s82
    %s97 = sphi 0, %s83
    %s101 = sphi 0, %s101
    %s103 = sphi 0, %s101
    %s104 = sphi 0, %s103
    %s118 = sphi 0, %s104
    %s122 = sphi 0, %s122
    %s124 = sphi 0, %s122
    %s125 = sphi 0, %s124
    %s139 = sphi 0, %s125
    %s143 = sphi 0, %s143
    %s145 = sphi 0, %s143
    %s146 = sphi 0, %s145
    %s160 = sphi 0, %s146
    %s164 = sphi 0, %s164
    %s166 = sphi 0, %s164
    %s167 = sphi 0, %s166
    %s181 = sphi 0, %s167
    %s185 = sphi 0, %s185
    %s187 = sphi 0, %s185
    %s188 = sphi 0, %s187
    %s202 = sphi 0, %s188
    %s206 = sphi 0, %s206
    %s208 = sphi 0, %s206
    %s209 = sphi 0, %s208
    %s223 = sphi 0, %s209
    %s227 = sphi 0, %s227
    %s229 = sphi 0, %s227
    %s230 = sphi 0, %s229
    %s244 = sphi 0, %s230
    %s248 = sphi 0, %s248
    %s250 = sphi 0, %s248
    %s251 = sphi 0, %s250
    %s265 = sphi 0, %s251
    %s269 = sphi 0, %s269
    %s271 = sphi 0, %s269
    %s272 = sphi 0, %s271
    %s286 = sphi 0, %s272
    %s290 = sphi 0, %s290
    %s292 = sphi 0, %s290
    %s293 = sphi 0, %s292
    %s307 = sphi 0, %s293
    %s311 = sphi 0, %s311
    %s313 = sphi 0, %s311
    %s314 = sphi 0, %s313
    %s328 = sphi 0, %s314
    %s334 = sphi 0, %s336
    %s337 = sphi 0, %s334
    %s338 = sphi 0, %s337
    %s354 = sphi 0, %s338
  $region4: #{esa_forward.5} parent=0 // loop_header_branch
    %23 = sbr.rel (%p21) target = $region8
  $region5: #{esa_forward.5} parent=0 // loop_body
    %s25 = ssub.s32 %s20, 1
    %s26 = ssub.s32 %s20, 2
    %s27 = sadd.s32 %s20, 1
    %s28 = ssub.s32 %s20, %s27
    %p29 = scmp.eq.s32.totalorder %s28, 0
    %s31 = sadd.s32 %s30, 1
    %s32 = scalar_select %p29, %s30, %s31
    %p35 = pneg %p29
    %p36 = scmp.eq.s32.totalorder %s20, 1
    %p37 = por %p35, %p36
    %p38 = scmp.ne.s32.totalorder %s30, %s33
    %p39 = scmp.eq.s32.totalorder %s20, 0
    %p40 = por %p38, %p39
    %p41 = scmp.ne.s32.totalorder %s30, %s33
    %p42 = scmp.eq.s32.totalorder %s25, 1
    %p43 = por %p41, %p42
    %p44 = scmp.ne.s32.totalorder %s33, %s34
    %p45 = scmp.eq.s32.totalorder %s25, 0
    %p46 = por %p44, %p45
    %p47 = scmp.ne.s32.totalorder %s33, %s34
    %p48 = scmp.eq.s32.totalorder %s26, 1
    %p49 = por %p47, %p48
    %p51 = scmp.ne.s32.totalorder %s34, %s50
    %p52 = scmp.eq.s32.totalorder %s26, 0
    %p53 = por %p51, %p52
    %s54 = ssub.s32 %s20, %s27
    %p55 = scmp.eq.s32.totalorder %s54, 0
    %s57 = sadd.s32 %s56, 1
    %s58 = scalar_select %p55, %s56, %s57
    %p61 = pneg %p55
    %p62 = scmp.eq.s32.totalorder %s20, 1
    %p63 = por %p61, %p62
    %p64 = scmp.ne.s32.totalorder %s56, %s59
    %p65 = scmp.eq.s32.totalorder %s20, 0
    %p66 = por %p64, %p65
    %p67 = scmp.ne.s32.totalorder %s56, %s59
    %p68 = scmp.eq.s32.totalorder %s25, 1
    %p69 = por %p67, %p68
    %p70 = scmp.ne.s32.totalorder %s59, %s60
    %p71 = scmp.eq.s32.totalorder %s25, 0
    %p72 = por %p70, %p71
    %p73 = scmp.ne.s32.totalorder %s59, %s60
    %p74 = scmp.eq.s32.totalorder %s26, 1
    %p75 = por %p73, %p74
    %p77 = scmp.ne.s32.totalorder %s60, %s76
    %p78 = scmp.eq.s32.totalorder %s26, 0
    %p79 = por %p77, %p78
    %s81 = sadd.s32 %s80, 1
    %p84 = scmp.eq.s32.totalorder %s20, 1
    %p85 = scmp.ne.s32.totalorder %s80, %s82
    %p86 = scmp.eq.s32.totalorder %s20, 0
    %p87 = por %p85, %p86
    %p88 = scmp.ne.s32.totalorder %s80, %s82
    %p89 = scmp.eq.s32.totalorder %s25, 1
    %p90 = por %p88, %p89
    %p91 = scmp.ne.s32.totalorder %s82, %s83
    %p92 = scmp.eq.s32.totalorder %s25, 0
    %p93 = por %p91, %p92
    %p94 = scmp.ne.s32.totalorder %s82, %s83
    %p95 = scmp.eq.s32.totalorder %s26, 1
    %p96 = por %p94, %p95
    %p98 = scmp.ne.s32.totalorder %s83, %s97
    %p99 = scmp.eq.s32.totalorder %s26, 0
    %p100 = por %p98, %p99
    %s102 = sadd.s32 %s101, 1
    %p105 = scmp.eq.s32.totalorder %s20, 1
    %p106 = scmp.ne.s32.totalorder %s101, %s103
    %p107 = scmp.eq.s32.totalorder %s20, 0
    %p108 = por %p106, %p107
    %p109 = scmp.ne.s32.totalorder %s101, %s103
    %p110 = scmp.eq.s32.totalorder %s25, 1
    %p111 = por %p109, %p110
    %p112 = scmp.ne.s32.totalorder %s103, %s104
    %p113 = scmp.eq.s32.totalorder %s25, 0
    %p114 = por %p112, %p113
    %p115 = scmp.ne.s32.totalorder %s103, %s104
    %p116 = scmp.eq.s32.totalorder %s26, 1
    %p117 = por %p115, %p116
    %p119 = scmp.ne.s32.totalorder %s104, %s118
    %p120 = scmp.eq.s32.totalorder %s26, 0
    %p121 = por %p119, %p120
    %s123 = sadd.s32 %s122, 1
    %p126 = scmp.eq.s32.totalorder %s20, 1
    %p127 = scmp.ne.s32.totalorder %s122, %s124
    %p128 = scmp.eq.s32.totalorder %s20, 0
    %p129 = por %p127, %p128
    %p130 = scmp.ne.s32.totalorder %s122, %s124
    %p131 = scmp.eq.s32.totalorder %s25, 1
    %p132 = por %p130, %p131
    %p133 = scmp.ne.s32.totalorder %s124, %s125
    %p134 = scmp.eq.s32.totalorder %s25, 0
    %p135 = por %p133, %p134
    %p136 = scmp.ne.s32.totalorder %s124, %s125
    %p137 = scmp.eq.s32.totalorder %s26, 1
    %p138 = por %p136, %p137
    %p140 = scmp.ne.s32.totalorder %s125, %s139
    %p141 = scmp.eq.s32.totalorder %s26, 0
    %p142 = por %p140, %p141
    %s144 = sadd.s32 %s143, 1
    %p147 = scmp.eq.s32.totalorder %s20, 1
    %p148 = scmp.ne.s32.totalorder %s143, %s145
    %p149 = scmp.eq.s32.totalorder %s20, 0
    %p150 = por %p148, %p149
    %p151 = scmp.ne.s32.totalorder %s143, %s145
    %p152 = scmp.eq.s32.totalorder %s25, 1
    %p153 = por %p151, %p152
    %p154 = scmp.ne.s32.totalorder %s145, %s146
    %p155 = scmp.eq.s32.totalorder %s25, 0
    %p156 = por %p154, %p155
    %p157 = scmp.ne.s32.totalorder %s145, %s146
    %p158 = scmp.eq.s32.totalorder %s26, 1
    %p159 = por %p157, %p158
    %p161 = scmp.ne.s32.totalorder %s146, %s160
    %p162 = scmp.eq.s32.totalorder %s26, 0
    %p163 = por %p161, %p162
    %s165 = sadd.s32 %s164, 1
    %p168 = scmp.eq.s32.totalorder %s20, 1
    %p169 = scmp.ne.s32.totalorder %s164, %s166
    %p170 = scmp.eq.s32.totalorder %s20, 0
    %p171 = por %p169, %p170
    %p172 = scmp.ne.s32.totalorder %s164, %s166
    %p173 = scmp.eq.s32.totalorder %s25, 1
    %p174 = por %p172, %p173
    %p175 = scmp.ne.s32.totalorder %s166, %s167
    %p176 = scmp.eq.s32.totalorder %s25, 0
    %p177 = por %p175, %p176
    %p178 = scmp.ne.s32.totalorder %s166, %s167
    %p179 = scmp.eq.s32.totalorder %s26, 1
    %p180 = por %p178, %p179
    %p182 = scmp.ne.s32.totalorder %s167, %s181
    %p183 = scmp.eq.s32.totalorder %s26, 0
    %p184 = por %p182, %p183
    %s186 = sadd.s32 %s185, 1
    %p189 = scmp.eq.s32.totalorder %s20, 1
    %p190 = scmp.ne.s32.totalorder %s185, %s187
    %p191 = scmp.eq.s32.totalorder %s20, 0
    %p192 = por %p190, %p191
    %p193 = scmp.ne.s32.totalorder %s185, %s187
    %p194 = scmp.eq.s32.totalorder %s25, 1
    %p195 = por %p193, %p194
    %p196 = scmp.ne.s32.totalorder %s187, %s188
    %p197 = scmp.eq.s32.totalorder %s25, 0
    %p198 = por %p196, %p197
    %p199 = scmp.ne.s32.totalorder %s187, %s188
    %p200 = scmp.eq.s32.totalorder %s26, 1
    %p201 = por %p199, %p200
    %p203 = scmp.ne.s32.totalorder %s188, %s202
    %p204 = scmp.eq.s32.totalorder %s26, 0
    %p205 = por %p203, %p204
    %s207 = sadd.s32 %s206, 1
    %p210 = scmp.eq.s32.totalorder %s20, 1
    %p211 = scmp.ne.s32.totalorder %s206, %s208
    %p212 = scmp.eq.s32.totalorder %s20, 0
    %p213 = por %p211, %p212
    %p214 = scmp.ne.s32.totalorder %s206, %s208
    %p215 = scmp.eq.s32.totalorder %s25, 1
    %p216 = por %p214, %p215
    %p217 = scmp.ne.s32.totalorder %s208, %s209
    %p218 = scmp.eq.s32.totalorder %s25, 0
    %p219 = por %p217, %p218
    %p220 = scmp.ne.s32.totalorder %s208, %s209
    %p221 = scmp.eq.s32.totalorder %s26, 1
    %p222 = por %p220, %p221
    %p224 = scmp.ne.s32.totalorder %s209, %s223
    %p225 = scmp.eq.s32.totalorder %s26, 0
    %p226 = por %p224, %p225
    %s228 = sadd.s32 %s227, 1
    %p231 = scmp.eq.s32.totalorder %s20, 1
    %p232 = scmp.ne.s32.totalorder %s227, %s229
    %p233 = scmp.eq.s32.totalorder %s20, 0
    %p234 = por %p232, %p233
    %p235 = scmp.ne.s32.totalorder %s227, %s229
    %p236 = scmp.eq.s32.totalorder %s25, 1
    %p237 = por %p235, %p236
    %p238 = scmp.ne.s32.totalorder %s229, %s230
    %p239 = scmp.eq.s32.totalorder %s25, 0
    %p240 = por %p238, %p239
    %p241 = scmp.ne.s32.totalorder %s229, %s230
    %p242 = scmp.eq.s32.totalorder %s26, 1
    %p243 = por %p241, %p242
    %p245 = scmp.ne.s32.totalorder %s230, %s244
    %p246 = scmp.eq.s32.totalorder %s26, 0
    %p247 = por %p245, %p246
    %s249 = sadd.s32 %s248, 1
    %p252 = scmp.eq.s32.totalorder %s20, 1
    %p253 = scmp.ne.s32.totalorder %s248, %s250
    %p254 = scmp.eq.s32.totalorder %s20, 0
    %p255 = por %p253, %p254
    %p256 = scmp.ne.s32.totalorder %s248, %s250
    %p257 = scmp.eq.s32.totalorder %s25, 1
    %p258 = por %p256, %p257
    %p259 = scmp.ne.s32.totalorder %s250, %s251
    %p260 = scmp.eq.s32.totalorder %s25, 0
    %p261 = por %p259, %p260
    %p262 = scmp.ne.s32.totalorder %s250, %s251
    %p263 = scmp.eq.s32.totalorder %s26, 1
    %p264 = por %p262, %p263
    %p266 = scmp.ne.s32.totalorder %s251, %s265
    %p267 = scmp.eq.s32.totalorder %s26, 0
    %p268 = por %p266, %p267
    %s270 = sadd.s32 %s269, 1
    %p273 = scmp.eq.s32.totalorder %s20, 1
    %p274 = scmp.ne.s32.totalorder %s269, %s271
    %p275 = scmp.eq.s32.totalorder %s20, 0
    %p276 = por %p274, %p275
    %p277 = scmp.ne.s32.totalorder %s269, %s271
    %p278 = scmp.eq.s32.totalorder %s25, 1
    %p279 = por %p277, %p278
    %p280 = scmp.ne.s32.totalorder %s271, %s272
    %p281 = scmp.eq.s32.totalorder %s25, 0
    %p282 = por %p280, %p281
    %p283 = scmp.ne.s32.totalorder %s271, %s272
    %p284 = scmp.eq.s32.totalorder %s26, 1
    %p285 = por %p283, %p284
    %p287 = scmp.ne.s32.totalorder %s272, %s286
    %p288 = scmp.eq.s32.totalorder %s26, 0
    %p289 = por %p287, %p288
    %s291 = sadd.s32 %s290, 1
    %p294 = scmp.eq.s32.totalorder %s20, 1
    %p295 = scmp.ne.s32.totalorder %s290, %s292
    %p296 = scmp.eq.s32.totalorder %s20, 0
    %p297 = por %p295, %p296
    %p298 = scmp.ne.s32.totalorder %s290, %s292
    %p299 = scmp.eq.s32.totalorder %s25, 1
    %p300 = por %p298, %p299
    %p301 = scmp.ne.s32.totalorder %s292, %s293
    %p302 = scmp.eq.s32.totalorder %s25, 0
    %p303 = por %p301, %p302
    %p304 = scmp.ne.s32.totalorder %s292, %s293
    %p305 = scmp.eq.s32.totalorder %s26, 1
    %p306 = por %p304, %p305
    %p308 = scmp.ne.s32.totalorder %s293, %s307
    %p309 = scmp.eq.s32.totalorder %s26, 0
    %p310 = por %p308, %p309
    %s312 = sadd.s32 %s311, 1
    %p315 = scmp.eq.s32.totalorder %s20, 1
    %p316 = scmp.ne.s32.totalorder %s311, %s313
    %p317 = scmp.eq.s32.totalorder %s20, 0
    %p318 = por %p316, %p317
    %p319 = scmp.ne.s32.totalorder %s311, %s313
    %p320 = scmp.eq.s32.totalorder %s25, 1
    %p321 = por %p319, %p320
    %p322 = scmp.ne.s32.totalorder %s313, %s314
    %p323 = scmp.eq.s32.totalorder %s25, 0
    %p324 = por %p322, %p323
    %p325 = scmp.ne.s32.totalorder %s313, %s314
    %p326 = scmp.eq.s32.totalorder %s26, 1
    %p327 = por %p325, %p326
    %p329 = scmp.ne.s32.totalorder %s314, %s328
    %p330 = scmp.eq.s32.totalorder %s26, 0
    %p331 = por %p329, %p330
    %s332 = ssub.s32 %s20, %s27
    %p333 = scmp.eq.s32.totalorder %s332, 0
    %s335 = sadd.s32 %s334, 1
    %s336 = scalar_select %p333, %s334, %s335
    %p339 = pneg %p333
    %p340 = scmp.eq.s32.totalorder %s20, 1
    %p341 = por %p339, %p340
    %p342 = scmp.ne.s32.totalorder %s334, %s337
    %p343 = scmp.eq.s32.totalorder %s20, 0
    %p344 = por %p342, %p343
    %p345 = scmp.ne.s32.totalorder %s334, %s337
    %p346 = scmp.eq.s32.totalorder %s25, 1
    %p347 = por %p345, %p346
    %p348 = scmp.ne.s32.totalorder %s337, %s338
    %p349 = scmp.eq.s32.totalorder %s25, 0
    %p350 = por %p348, %p349
    %p351 = scmp.ne.s32.totalorder %s337, %s338
    %p352 = scmp.eq.s32.totalorder %s26, 1
    %p353 = por %p351, %p352
    %p355 = scmp.ne.s32.totalorder %s338, %s354
    %p356 = scmp.eq.s32.totalorder %s26, 0
    %p357 = por %p355, %p356
    %p358 = scmp.le.s32.totalorder 1, %s20
    %p359 = scmp.lt.s32.totalorder %s20, 3
    %p360 = pnand %p358, %p359
    %p361 = pneg %p360
    // Predicated region
    $region9: #{esa_forward.5} parent=5 // pred_check
      _
    $region10: #{esa_forward.5} parent=5 // pred_check_branch
      %363 = sbr.rel (%p360) target = $region12
    $region11: #{esa_forward.5} parent=5 // pred_region
      %s364 = ssub.s32 %s20, 1
      // Predicated region
      $region13: #{esa_forward.5} parent=11 // pred_check
        %p365 = pneg %p93
      $region14: #{esa_forward.5} parent=11 // pred_check_branch
        %367 = sbr.rel (%p365) target = $region16
      $region15: #{esa_forward.5} parent=11 // pred_region
        _
      $region16: #{esa_forward.5} parent=11 // pred_fallthru
        _
      // Predicated region
      $region17: #{esa_forward.5} parent=11 // pred_check
        %p368 = pneg %p114
      $region18: #{esa_forward.5} parent=11 // pred_check_branch
        %370 = sbr.rel (%p368) target = $region20
      $region19: #{esa_forward.5} parent=11 // pred_region
        _
      $region20: #{esa_forward.5} parent=11 // pred_fallthru
        _
      // Predicated region
      $region21: #{esa_forward.5} parent=11 // pred_check
        %p371 = pneg %p135
      $region22: #{esa_forward.5} parent=11 // pred_check_branch
        %373 = sbr.rel (%p371) target = $region24
      $region23: #{esa_forward.5} parent=11 // pred_region
        _
      $region24: #{esa_forward.5} parent=11 // pred_fallthru
        _
      // Predicated region
      $region25: #{esa_forward.5} parent=11 // pred_check
        %p374 = pneg %p156
      $region26: #{esa_forward.5} parent=11 // pred_check_branch
        %376 = sbr.rel (%p374) target = $region28
      $region27: #{esa_forward.5} parent=11 // pred_region
        _
      $region28: #{esa_forward.5} parent=11 // pred_fallthru
        _
      // Predicated region
      $region29: #{esa_forward.5} parent=11 // pred_check
        %p377 = pneg %p177
      $region30: #{esa_forward.5} parent=11 // pred_check_branch
        %379 = sbr.rel (%p377) target = $region32
      $region31: #{esa_forward.5} parent=11 // pred_region
        _
      $region32: #{esa_forward.5} parent=11 // pred_fallthru
        _
      // Predicated region
      $region33: #{esa_forward.5} parent=11 // pred_check
        %p380 = pneg %p198
      $region34: #{esa_forward.5} parent=11 // pred_check_branch
        %382 = sbr.rel (%p380) target = $region36
      $region35: #{esa_forward.5} parent=11 // pred_region
        _
      $region36: #{esa_forward.5} parent=11 // pred_fallthru
        _
      // Predicated region
      $region37: #{esa_forward.5} parent=11 // pred_check
        %p383 = pneg %p219
      $region38: #{esa_forward.5} parent=11 // pred_check_branch
        %385 = sbr.rel (%p383) target = $region40
      $region39: #{esa_forward.5} parent=11 // pred_region
        _
      $region40: #{esa_forward.5} parent=11 // pred_fallthru
        _
      // Predicated region
      $region41: #{esa_forward.5} parent=11 // pred_check
        %p386 = pneg %p240
      $region42: #{esa_forward.5} parent=11 // pred_check_branch
        %388 = sbr.rel (%p386) target = $region44
      $region43: #{esa_forward.5} parent=11 // pred_region
        _
      $region44: #{esa_forward.5} parent=11 // pred_fallthru
        _
      // Predicated region
      $region45: #{esa_forward.5} parent=11 // pred_check
        %p389 = pneg %p261
      $region46: #{esa_forward.5} parent=11 // pred_check_branch
        %391 = sbr.rel (%p389) target = $region48
      $region47: #{esa_forward.5} parent=11 // pred_region
        _
      $region48: #{esa_forward.5} parent=11 // pred_fallthru
        _
      // Predicated region
      $region49: #{esa_forward.5} parent=11 // pred_check
        %p392 = pneg %p282
      $region50: #{esa_forward.5} parent=11 // pred_check_branch
        %394 = sbr.rel (%p392) target = $region52
      $region51: #{esa_forward.5} parent=11 // pred_region
        _
      $region52: #{esa_forward.5} parent=11 // pred_fallthru
        _
      // Predicated region
      $region53: #{esa_forward.5} parent=11 // pred_check
        %p395 = pneg %p303
      $region54: #{esa_forward.5} parent=11 // pred_check_branch
        %397 = sbr.rel (%p395) target = $region56
      $region55: #{esa_forward.5} parent=11 // pred_region
        _
      $region56: #{esa_forward.5} parent=11 // pred_fallthru
        _
      // Predicated region
      $region57: #{esa_forward.5} parent=11 // pred_check
        %p398 = pneg %p324
      $region58: #{esa_forward.5} parent=11 // pred_check_branch
        %400 = sbr.rel (%p398) target = $region60
      $region59: #{esa_forward.5} parent=11 // pred_region
        _
      $region60: #{esa_forward.5} parent=11 // pred_fallthru
        _
    $region12: #{esa_forward.5} parent=5 // pred_fallthru
      _
    %p401 = scmp.lt.s32.totalorder %s20, 2
    // Predicated region
    $region61: #{esa_forward.5} parent=5 // pred_check
      %p402 = pneg %p401
    $region62: #{esa_forward.5} parent=5 // pred_check_branch
      %404 = sbr.rel (%p402) target = $region64
    $region63: #{esa_forward.5} parent=5 // pred_region
      // Predicated region
      $region65: #{esa_forward.5} parent=63 // pred_check
        %p405 = pneg %p40
      $region66: #{esa_forward.5} parent=63 // pred_check_branch
        %407 = sbr.rel (%p405) target = $region68
      $region67: #{esa_forward.5} parent=63 // pred_region
        %p408 = scmp.lt.s32.totalorder %s20, 1
        %s409 = scalar_select %p408, %s20, 1
        %s410 = scalar_lea.vmem %s0, %s409
      $region68: #{esa_forward.5} parent=63 // pred_fallthru
        _
      // Predicated region
      $region69: #{esa_forward.5} parent=63 // pred_check
        %p411 = pneg %p66
      $region70: #{esa_forward.5} parent=63 // pred_check_branch
        %413 = sbr.rel (%p411) target = $region72
      $region71: #{esa_forward.5} parent=63 // pred_region
        %p414 = scmp.lt.s32.totalorder %s20, 1
        %s415 = scalar_select %p414, %s20, 1
        %s416 = smul.addr %s415, 5
        %s417 = smul.addr %s416, 2
        %s418 = scalar_lea.vmem %s1, %s417
      $region72: #{esa_forward.5} parent=63 // pred_fallthru
        _
    $region64: #{esa_forward.5} parent=5 // pred_fallthru
      _
    %p419 = scmp.le.s32.totalorder 1, %s20
    %p420 = scmp.lt.s32.totalorder %s20, 3
    %p421 = pnand %p419, %p420
    %p422 = pneg %p421
    // Predicated region
    $region73: #{esa_forward.5} parent=5 // pred_check
      _
    $region74: #{esa_forward.5} parent=5 // pred_check_branch
      %424 = sbr.rel (%p421) target = $region76
    $region75: #{esa_forward.5} parent=5 // pred_region
      %s425 = ssub.s32 %s20, 1
      %p426 = scmp.lt.s32.totalorder %s25, 1
      %s427 = scalar_select %p426, %s25, 1
      %s428 = scalar_lea.vmem %s0, %s427
      %p429 = pneg %p46
      %p430 = pneg %p43
      %p431 = scmp.lt.s32.totalorder %s25, 1
      %s432 = scalar_select %p431, %s25, 1
      %s433 = smul.addr %s432, 5
      %s434 = smul.addr %s433, 2
      %s435 = scalar_lea.vmem %s1, %s434
      %p436 = pneg %p72
      %p437 = pneg %p69
      %p438 = pneg %p93
      %p439 = pneg %p90
      %p440 = pneg %p114
      %p441 = pneg %p111
      %p442 = pneg %p135
      %p443 = pneg %p132
      %p444 = pneg %p156
      %p445 = pneg %p153
      %p446 = pneg %p177
      %p447 = pneg %p174
      %p448 = pneg %p198
      %p449 = pneg %p195
      %p450 = pneg %p219
      %p451 = pneg %p216
      %p452 = pneg %p240
      %p453 = pneg %p237
      %p454 = pneg %p261
      %p455 = pneg %p258
      %p456 = pneg %p282
      %p457 = pneg %p279
      %p458 = pneg %p303
      %p459 = pneg %p300
      %p460 = pneg %p324
      %p461 = pneg %p321
      %p462 = pneg %p350
      %p463 = pneg %p347
      %p464 = scmp.lt.s32.totalorder %s25, 1
      %s465 = scalar_select %p464, %s25, 1
      %s466 = smul.addr %s465, 10
      %s467 = smul.addr %s466, 8
      %s468 = scalar_lea.vmem %s14, %s467
      %p469 = scmp.lt.s32.totalorder %s25, 1
      %s470 = scalar_select %p469, %s25, 1
      %s471 = scalar_lea.vmem %s0, %s470
      %p472 = scmp.lt.s32.totalorder %s25, 1
      %s473 = scalar_select %p472, %s25, 1
      %s474 = smul.addr %s473, 5
      %s475 = smul.addr %s474, 2
      %s476 = scalar_lea.vmem %s1, %s475
      %p477 = scmp.lt.s32.totalorder %s25, 1
      %s478 = scalar_select %p477, %s25, 1
      %s479 = smul.addr %s478, 10
      %s480 = smul.addr %s479, 8
      %s481 = scalar_lea.vmem %s14, %s480
      %v482 = vld [vmem:[%s471] sm:$0x1]
      %v483 = vld [vmem:[%s4] sm:$0xff]
      %v484 = vld [vmem:[%s4 + $0x8] sm:$0xff]
      %v485 = vld [vmem:[%s5] sm:$0x1]
      %vm486 = vcmask 130048
      %v488 = vsel %vm486, %v482, 0
      %490 = vmatprep.subr.mxu0 0.0
      %491 = vmatpush1.msra.mxu0 %v483
      %492 = vmatprep.subr.mxu0 0.0
      %493 = vmatpush1.msra.mxu0 %v484
      %494 = vmatprep.subr.mxu0 0.0
      %495 = vmatpush1.msra.mxu0 0.0
      %496 = vmatprep.subr.mxu0 0.0
      %497 = vmatpush1.msra.mxu0 0.0
      %498 = vmatprep.subr.mxu0 0.0
      %499 = vmatpush1.msra.mxu0 0.0
      %500 = vmatprep.subr.mxu0 0.0
      %501 = vmatpush1.msra.mxu0 0.0
      %502 = vmatprep.subr.mxu0 0.0
      %503 = vmatpush1.msra.mxu0 0.0
      %504 = vmatprep.subr.mxu0 0.0
      %505 = vmatpush1.msra.mxu0 0.0
      %506 = vmatprep.subr.mxu0 0.0
      %507 = vmatpush1.msra.mxu0 0.0
      %508 = vmatprep.subr.mxu0 0.0
      %509 = vmatpush1.msra.mxu0 0.0
      %510 = vmatprep.subr.mxu0 0.0
      %511 = vmatpush1.msra.mxu0 0.0
      %512 = vmatprep.subr.mxu0 0.0
      %513 = vmatpush1.msra.mxu0 0.0
      %514 = vmatprep.subr.mxu0 0.0
      %515 = vmatpush1.msra.mxu0 0.0
      %516 = vmatprep.subr.mxu0 0.0
      %517 = vmatpush1.msra.mxu0 0.0
      %518 = vmatprep.subr.mxu0 0.0
      %519 = vmatpush1.msra.mxu0 0.0
      %520 = vmatprep.subr.mxu0 0.0
      %521 = vmatpush1.msra.mxu0 0.0
      %522 = vmatprep.subr.mxu0 0.0
      %523 = vmatpush1.msra.mxu0 0.0
      %524 = vmatprep.subr.mxu0 0.0
      %525 = vmatpush1.msra.mxu0 0.0
      %526 = vmatprep.subr.mxu0 0.0
      %527 = vmatpush1.msra.mxu0 0.0
      %528 = vmatprep.subr.mxu0 0.0
      %529 = vmatpush1.msra.mxu0 0.0
      %530 = vmatprep.subr.mxu0 0.0
      %531 = vmatpush1.msra.mxu0 0.0
      %532 = vmatprep.subr.mxu0 0.0
      %533 = vmatpush1.msra.mxu0 0.0
      %534 = vmatprep.subr.mxu0 0.0
      %535 = vmatpush1.msra.mxu0 0.0
      %536 = vmatprep.subr.mxu0 0.0
      %537 = vmatpush1.msra.mxu0 0.0
      %538 = vmatprep.subr.mxu0 0.0
      %539 = vmatpush1.msra.mxu0 0.0
      %540 = vmatprep.subr.mxu0 0.0
      %541 = vmatpush1.msra.mxu0 0.0
      %542 = vmatprep.subr.mxu0 0.0
      %543 = vmatpush1.msra.mxu0 0.0
      %544 = vmatprep.subr.mxu0 0.0
      %545 = vmatpush1.msra.mxu0 0.0
      %546 = vmatprep.subr.mxu0 0.0
      %547 = vmatpush1.msra.mxu0 0.0
      %548 = vmatprep.subr.mxu0 0.0
      %549 = vmatpush1.msra.mxu0 0.0
      %550 = vmatprep.subr.mxu0 0.0
      %551 = vmatpush1.msra.mxu0 0.0
      %552 = vmatprep.subr.mxu0 0.0
      %553 = vmatpush1.msra.mxu0 0.0
      %554 = vmatprep.mubr.f32.mxu0 0.0
      %555 = vmatmul.mubr.f32.gmra.mrb[0].mxu0 %v488
      %v556 = vpop.f32.mrb[0].mxu0
      %v557 = vadd.f32 %v485, %v556
      %v558 = vpop.f32.mrb[0].mxu0
      %559 = vdwg.mxu0
      %v560 = vmax.f32 %v557, 0.0
      %v561 = vld [vmem:[%s6] sm:$0xff]
      %v562 = vld [vmem:[%s6 + $0x8] sm:$0xff]
      %v563 = vld [vmem:[%s7] sm:$0x1]
      %v565 = vsel %vm486, %v560, 0
      %567 = vmatprep.subr.mxu0 0.0
      %568 = vmatpush1.msra.mxu0 %v561
      %569 = vmatprep.subr.mxu0 0.0
      %570 = vmatpush1.msra.mxu0 %v562
      %571 = vmatprep.subr.mxu0 0.0
      %572 = vmatpush1.msra.mxu0 0.0
      %573 = vmatprep.subr.mxu0 0.0
      %574 = vmatpush1.msra.mxu0 0.0
      %575 = vmatprep.subr.mxu0 0.0
      %576 = vmatpush1.msra.mxu0 0.0
      %577 = vmatprep.subr.mxu0 0.0
      %578 = vmatpush1.msra.mxu0 0.0
      %579 = vmatprep.subr.mxu0 0.0
      %580 = vmatpush1.msra.mxu0 0.0
      %581 = vmatprep.subr.mxu0 0.0
      %582 = vmatpush1.msra.mxu0 0.0
      %583 = vmatprep.subr.mxu0 0.0
      %584 = vmatpush1.msra.mxu0 0.0
      %585 = vmatprep.subr.mxu0 0.0
      %586 = vmatpush1.msra.mxu0 0.0
      %587 = vmatprep.subr.mxu0 0.0
      %588 = vmatpush1.msra.mxu0 0.0
      %589 = vmatprep.subr.mxu0 0.0
      %590 = vmatpush1.msra.mxu0 0.0
      %591 = vmatprep.subr.mxu0 0.0
      %592 = vmatpush1.msra.mxu0 0.0
      %593 = vmatprep.subr.mxu0 0.0
      %594 = vmatpush1.msra.mxu0 0.0
      %595 = vmatprep.subr.mxu0 0.0
      %596 = vmatpush1.msra.mxu0 0.0
      %597 = vmatprep.subr.mxu0 0.0
      %598 = vmatpush1.msra.mxu0 0.0
      %599 = vmatprep.subr.mxu0 0.0
      %600 = vmatpush1.msra.mxu0 0.0
      %601 = vmatprep.subr.mxu0 0.0
      %602 = vmatpush1.msra.mxu0 0.0
      %603 = vmatprep.subr.mxu0 0.0
      %604 = vmatpush1.msra.mxu0 0.0
      %605 = vmatprep.subr.mxu0 0.0
      %606 = vmatpush1.msra.mxu0 0.0
      %607 = vmatprep.subr.mxu0 0.0
      %608 = vmatpush1.msra.mxu0 0.0
      %609 = vmatprep.subr.mxu0 0.0
      %610 = vmatpush1.msra.mxu0 0.0
      %611 = vmatprep.subr.mxu0 0.0
      %612 = vmatpush1.msra.mxu0 0.0
      %613 = vmatprep.subr.mxu0 0.0
      %614 = vmatpush1.msra.mxu0 0.0
      %615 = vmatprep.subr.mxu0 0.0
      %616 = vmatpush1.msra.mxu0 0.0
      %617 = vmatprep.subr.mxu0 0.0
      %618 = vmatpush1.msra.mxu0 0.0
      %619 = vmatprep.subr.mxu0 0.0
      %620 = vmatpush1.msra.mxu0 0.0
      %621 = vmatprep.subr.mxu0 0.0
      %622 = vmatpush1.msra.mxu0 0.0
      %623 = vmatprep.subr.mxu0 0.0
      %624 = vmatpush1.msra.mxu0 0.0
      %625 = vmatprep.subr.mxu0 0.0
      %626 = vmatpush1.msra.mxu0 0.0
      %627 = vmatprep.subr.mxu0 0.0
      %628 = vmatpush1.msra.mxu0 0.0
      %629 = vmatprep.subr.mxu0 0.0
      %630 = vmatpush1.msra.mxu0 0.0
      %631 = vmatprep.mubr.f32.mxu0 0.0
      %632 = vmatmul.mubr.f32.gmra.mrb[0].mxu0 %v565
      %v633 = vpop.f32.mrb[0].mxu0
      %v634 = vadd.f32 %v563, %v633
      %v635 = vpop.f32.mrb[0].mxu0
      %636 = vdwg.mxu0
      %v637 = vmax.f32 %v634, 0.0
      %v638 = vld [vmem:[%s8] sm:$0xff]
      %v639 = vld [vmem:[%s8 + $0x8] sm:$0xff]
      %v641 = vsel %vm486, %v637, 0
      %643 = vmatprep.subr.mxu0 0.0
      %644 = vmatpush1.msra.mxu0 %v638
      %645 = vmatprep.subr.mxu0 0.0
      %646 = vmatpush1.msra.mxu0 %v639
      %647 = vmatprep.subr.mxu0 0.0
      %648 = vmatpush1.msra.mxu0 0.0
      %649 = vmatprep.subr.mxu0 0.0
      %650 = vmatpush1.msra.mxu0 0.0
      %651 = vmatprep.subr.mxu0 0.0
      %652 = vmatpush1.msra.mxu0 0.0
      %653 = vmatprep.subr.mxu0 0.0
      %654 = vmatpush1.msra.mxu0 0.0
      %655 = vmatprep.subr.mxu0 0.0
      %656 = vmatpush1.msra.mxu0 0.0
      %657 = vmatprep.subr.mxu0 0.0
      %658 = vmatpush1.msra.mxu0 0.0
      %659 = vmatprep.subr.mxu0 0.0
      %660 = vmatpush1.msra.mxu0 0.0
      %661 = vmatprep.subr.mxu0 0.0
      %662 = vmatpush1.msra.mxu0 0.0
      %663 = vmatprep.subr.mxu0 0.0
      %664 = vmatpush1.msra.mxu0 0.0
      %665 = vmatprep.subr.mxu0 0.0
      %666 = vmatpush1.msra.mxu0 0.0
      %667 = vmatprep.subr.mxu0 0.0
      %668 = vmatpush1.msra.mxu0 0.0
      %669 = vmatprep.subr.mxu0 0.0
      %670 = vmatpush1.msra.mxu0 0.0
      %671 = vmatprep.subr.mxu0 0.0
      %672 = vmatpush1.msra.mxu0 0.0
      %673 = vmatprep.subr.mxu0 0.0
      %674 = vmatpush1.msra.mxu0 0.0
      %675 = vmatprep.subr.mxu0 0.0
      %676 = vmatpush1.msra.mxu0 0.0
      %677 = vmatprep.subr.mxu0 0.0
      %678 = vmatpush1.msra.mxu0 0.0
      %679 = vmatprep.subr.mxu0 0.0
      %680 = vmatpush1.msra.mxu0 0.0
      %681 = vmatprep.subr.mxu0 0.0
      %682 = vmatpush1.msra.mxu0 0.0
      %683 = vmatprep.subr.mxu0 0.0
      %684 = vmatpush1.msra.mxu0 0.0
      %685 = vmatprep.subr.mxu0 0.0
      %686 = vmatpush1.msra.mxu0 0.0
      %687 = vmatprep.subr.mxu0 0.0
      %688 = vmatpush1.msra.mxu0 0.0
      %689 = vmatprep.subr.mxu0 0.0
      %690 = vmatpush1.msra.mxu0 0.0
      %691 = vmatprep.subr.mxu0 0.0
      %692 = vmatpush1.msra.mxu0 0.0
      %693 = vmatprep.subr.mxu0 0.0
      %694 = vmatpush1.msra.mxu0 0.0
      %695 = vmatprep.subr.mxu0 0.0
      %696 = vmatpush1.msra.mxu0 0.0
      %697 = vmatprep.subr.mxu0 0.0
      %698 = vmatpush1.msra.mxu0 0.0
      %699 = vmatprep.subr.mxu0 0.0
      %700 = vmatpush1.msra.mxu0 0.0
      %701 = vmatprep.subr.mxu0 0.0
      %702 = vmatpush1.msra.mxu0 0.0
      %703 = vmatprep.subr.mxu0 0.0
      %704 = vmatpush1.msra.mxu0 0.0
      %705 = vmatprep.subr.mxu0 0.0
      %706 = vmatpush1.msra.mxu0 0.0
      %707 = vmatprep.mubr.f32.mxu0 0.0
      %708 = vmatmul.mubr.f32.gmra.mrb[0].mxu0 %v641
      %v709 = vpop.f32.mrb[0].mxu0
      %v710 = vadd.f32 0.0, %v709
      %v711 = vpop.f32.mrb[0].mxu0
      %712 = vdwg.mxu0
      %v713 = vadd.f32 %v560, %v710
      %v714 = vld [vmem:[%s9] sm:$0x1]
      %v715 = vadd.f32 %v713, %v714
      %v716 = vld [vmem:[%s2] sm:$0xf]
      %v717 = vlaneseq
      %v718 = vshrl.u32 %v717, 7
      %v719 = vsub.s32 0, %v718
      %v720 = vrot.slane %v715, %v719
      %v721 = vmul.f32 %v716, %v720
      %v722 = vld [vmem:[%s3] sm:$0xff]
      %v723 = vld [vmem:[%s3 + $0x8] sm:$0xff]
      %v724 = vld [vmem:[%s3 + $0x10] sm:$0xff]
      %v725 = vld [vmem:[%s3 + $0x18] sm:$0xff]
      %v726 = vld [vmem:[%s3 + $0x20] sm:$0xff]
      %v727 = vld [vmem:[%s3 + $0x28] sm:$0xff]
      %v728 = vld [vmem:[%s3 + $0x30] sm:$0xff]
      %v729 = vld [vmem:[%s3 + $0x38] sm:$0xff]
      %v730 = vld [vmem:[%s3 + $0x40] sm:$0xff]
      %v731 = vld [vmem:[%s3 + $0x48] sm:$0xff]
      %v732 = vld [vmem:[%s476] sm:$0xff]
      %v733 = vld [vmem:[%s476 + $0x8] sm:$0x3]
      %v734 = vunpack.c.l.bf16 %v732
      %v735 = vunpack.c.h.bf16 %v732
      %v736 = vunpack.c.l.bf16 %v733
      %v737 = vld [vmem:[%s10] sm:$0xf]
      %v738 = vld [vmem:[%s11] sm:$0xf]
      %740 = vset.pattern.permute.xlu0 0
      %741 = vperm.xlu0 %740, %v738
      %v742 = vpop.permute.xlu0 %741
      %v747 = vcombine.high %v734, %v734
      %v748 = vcombine.high %v735, %v735
      %vm749 = vcmask 31744
      %v751 = vsel %vm749, %v737, 0
      %vm753 = vcmask 1043456
      %v754 = vsel %vm753, %v734, 0
      %v756 = vsel %vm753, %v747, 0
      %v758 = vsel %vm753, %v735, 0
      %v760 = vsel %vm753, %v748, 0
      %v762 = vsel %vm753, %v736, 0
      %764 = vmatprep.subr.mxu0 %v756
      %765 = vmatpush1.msra.mxu0 %v754
      %766 = vmatprep.subr.mxu0 0.0
      %767 = vmatpush1.msra.mxu0 0.0
      %768 = vmatprep.subr.mxu0 0.0
      %769 = vmatpush1.msra.mxu0 0.0
      %770 = vmatprep.subr.mxu0 0.0
      %771 = vmatpush1.msra.mxu0 0.0
      %772 = vmatprep.subr.mxu0 0.0
      %773 = vmatpush1.msra.mxu0 0.0
      %774 = vmatprep.subr.mxu0 0.0
      %775 = vmatpush1.msra.mxu0 0.0
      %776 = vmatprep.subr.mxu0 0.0
      %777 = vmatpush1.msra.mxu0 0.0
      %778 = vmatprep.subr.mxu0 0.0
      %779 = vmatpush1.msra.mxu0 0.0
      %780 = vmatprep.subr.mxu0 0.0
      %781 = vmatpush1.msra.mxu0 0.0
      %782 = vmatprep.subr.mxu0 0.0
      %783 = vmatpush1.msra.mxu0 0.0
      %784 = vmatprep.subr.mxu0 0.0
      %785 = vmatpush1.msra.mxu0 0.0
      %786 = vmatprep.subr.mxu0 0.0
      %787 = vmatpush1.msra.mxu0 0.0
      %788 = vmatprep.subr.mxu0 0.0
      %789 = vmatpush1.msra.mxu0 0.0
      %790 = vmatprep.subr.mxu0 0.0
      %791 = vmatpush1.msra.mxu0 0.0
      %792 = vmatprep.subr.mxu0 0.0
      %793 = vmatpush1.msra.mxu0 0.0
      %794 = vmatprep.subr.mxu0 0.0
      %795 = vmatpush1.msra.mxu0 0.0
      %796 = vmatprep.subr.mxu0 0.0
      %797 = vmatpush1.msra.mxu0 0.0
      %798 = vmatprep.subr.mxu0 0.0
      %799 = vmatpush1.msra.mxu0 0.0
      %800 = vmatprep.subr.mxu0 0.0
      %801 = vmatpush1.msra.mxu0 0.0
      %802 = vmatprep.subr.mxu0 0.0
      %803 = vmatpush1.msra.mxu0 0.0
      %804 = vmatprep.subr.mxu0 0.0
      %805 = vmatpush1.msra.mxu0 0.0
      %806 = vmatprep.subr.mxu0 0.0
      %807 = vmatpush1.msra.mxu0 0.0
      %808 = vmatprep.subr.mxu0 0.0
      %809 = vmatpush1.msra.mxu0 0.0
      %810 = vmatprep.subr.mxu0 0.0
      %811 = vmatpush1.msra.mxu0 0.0
      %812 = vmatprep.subr.mxu0 0.0
      %813 = vmatpush1.msra.mxu0 0.0
      %814 = vmatprep.subr.mxu0 0.0
      %815 = vmatpush1.msra.mxu0 0.0
      %816 = vmatprep.subr.mxu0 0.0
      %817 = vmatpush1.msra.mxu0 0.0
      %818 = vmatprep.subr.mxu0 0.0
      %819 = vmatpush1.msra.mxu0 0.0
      %820 = vmatprep.subr.mxu0 0.0
      %821 = vmatpush1.msra.mxu0 0.0
      %822 = vmatprep.subr.mxu0 0.0
      %823 = vmatpush1.msra.mxu0 0.0
      %824 = vmatprep.subr.mxu0 0.0
      %825 = vmatpush1.msra.mxu0 0.0
      %826 = vmatprep.subr.mxu0 0.0
      %827 = vmatpush1.msra.mxu0 0.0
      %828 = vmatprep.mubr.f32.mxu0 0.0
      %829 = vmatmul.mubr.f32.gmra.mrb[0].mxu0 %v751
      %v830 = vpop.f32.mrb[0].mxu0
      %v831 = vadd.f32 %v742, %v830
      %v832 = vpop.f32.mrb[0].mxu0
      %v833 = vadd.f32 %v742, %v832
      %834 = vdwg.mxu0
      %835 = vmatprep.subr.mxu0 %v760
      %836 = vmatpush1.msra.mxu0 %v758
      %837 = vmatprep.subr.mxu0 0.0
      %838 = vmatpush1.msra.mxu0 0.0
      %839 = vmatprep.subr.mxu0 0.0
      %840 = vmatpush1.msra.mxu0 0.0
      %841 = vmatprep.subr.mxu0 0.0
      %842 = vmatpush1.msra.mxu0 0.0
      %843 = vmatprep.subr.mxu0 0.0
      %844 = vmatpush1.msra.mxu0 0.0
      %845 = vmatprep.subr.mxu0 0.0
      %846 = vmatpush1.msra.mxu0 0.0
      %847 = vmatprep.subr.mxu0 0.0
      %848 = vmatpush1.msra.mxu0 0.0
      %849 = vmatprep.subr.mxu0 0.0
      %850 = vmatpush1.msra.mxu0 0.0
      %851 = vmatprep.subr.mxu0 0.0
      %852 = vmatpush1.msra.mxu0 0.0
      %853 = vmatprep.subr.mxu0 0.0
      %854 = vmatpush1.msra.mxu0 0.0
      %855 = vmatprep.subr.mxu0 0.0
      %856 = vmatpush1.msra.mxu0 0.0
      %857 = vmatprep.subr.mxu0 0.0
      %858 = vmatpush1.msra.mxu0 0.0
      %859 = vmatprep.subr.mxu0 0.0
      %860 = vmatpush1.msra.mxu0 0.0
      %861 = vmatprep.subr.mxu0 0.0
      %862 = vmatpush1.msra.mxu0 0.0
      %863 = vmatprep.subr.mxu0 0.0
      %864 = vmatpush1.msra.mxu0 0.0
      %865 = vmatprep.subr.mxu0 0.0
      %866 = vmatpush1.msra.mxu0 0.0
      %867 = vmatprep.subr.mxu0 0.0
      %868 = vmatpush1.msra.mxu0 0.0
      %869 = vmatprep.subr.mxu0 0.0
      %870 = vmatpush1.msra.mxu0 0.0
      %871 = vmatprep.subr.mxu0 0.0
      %872 = vmatpush1.msra.mxu0 0.0
      %873 = vmatprep.subr.mxu0 0.0
      %874 = vmatpush1.msra.mxu0 0.0
      %875 = vmatprep.subr.mxu0 0.0
      %876 = vmatpush1.msra.mxu0 0.0
      %877 = vmatprep.subr.mxu0 0.0
      %878 = vmatpush1.msra.mxu0 0.0
      %879 = vmatprep.subr.mxu0 0.0
      %880 = vmatpush1.msra.mxu0 0.0
      %881 = vmatprep.subr.mxu0 0.0
      %882 = vmatpush1.msra.mxu0 0.0
      %883 = vmatprep.subr.mxu0 0.0
      %884 = vmatpush1.msra.mxu0 0.0
      %885 = vmatprep.subr.mxu0 0.0
      %886 = vmatpush1.msra.mxu0 0.0
      %887 = vmatprep.subr.mxu0 0.0
      %888 = vmatpush1.msra.mxu0 0.0
      %889 = vmatprep.subr.mxu0 0.0
      %890 = vmatpush1.msra.mxu0 0.0
      %891 = vmatprep.subr.mxu0 0.0
      %892 = vmatpush1.msra.mxu0 0.0
      %893 = vmatprep.subr.mxu0 0.0
      %894 = vmatpush1.msra.mxu0 0.0
      %895 = vmatprep.subr.mxu0 0.0
      %896 = vmatpush1.msra.mxu0 0.0
      %897 = vmatprep.subr.mxu0 0.0
      %898 = vmatpush1.msra.mxu0 0.0
      %899 = vmatprep.mubr.f32.mxu0 0.0
      %900 = vmatmul.mubr.f32.gmra.mrb[0].mxu0 %v751
      %v901 = vpop.f32.mrb[0].mxu0
      %v902 = vadd.f32 %v742, %v901
      %v903 = vpop.f32.mrb[0].mxu0
      %v904 = vadd.f32 %v742, %v903
      %905 = vdwg.mxu0
      %906 = vmatprep.subr.mxu0 0.0
      %907 = vmatpush1.msra.mxu0 %v762
      %908 = vmatprep.subr.mxu0 0.0
      %909 = vmatpush1.msra.mxu0 0.0
      %910 = vmatprep.subr.mxu0 0.0
      %911 = vmatpush1.msra.mxu0 0.0
      %912 = vmatprep.subr.mxu0 0.0
      %913 = vmatpush1.msra.mxu0 0.0
      %914 = vmatprep.subr.mxu0 0.0
      %915 = vmatpush1.msra.mxu0 0.0
      %916 = vmatprep.subr.mxu0 0.0
      %917 = vmatpush1.msra.mxu0 0.0
      %918 = vmatprep.subr.mxu0 0.0
      %919 = vmatpush1.msra.mxu0 0.0
      %920 = vmatprep.subr.mxu0 0.0
      %921 = vmatpush1.msra.mxu0 0.0
      %922 = vmatprep.subr.mxu0 0.0
      %923 = vmatpush1.msra.mxu0 0.0
      %924 = vmatprep.subr.mxu0 0.0
      %925 = vmatpush1.msra.mxu0 0.0
      %926 = vmatprep.subr.mxu0 0.0
      %927 = vmatpush1.msra.mxu0 0.0
      %928 = vmatprep.subr.mxu0 0.0
      %929 = vmatpush1.msra.mxu0 0.0
      %930 = vmatprep.subr.mxu0 0.0
      %931 = vmatpush1.msra.mxu0 0.0
      %932 = vmatprep.subr.mxu0 0.0
      %933 = vmatpush1.msra.mxu0 0.0
      %934 = vmatprep.subr.mxu0 0.0
      %935 = vmatpush1.msra.mxu0 0.0
      %936 = vmatprep.subr.mxu0 0.0
      %937 = vmatpush1.msra.mxu0 0.0
      %938 = vmatprep.subr.mxu0 0.0
      %939 = vmatpush1.msra.mxu0 0.0
      %940 = vmatprep.subr.mxu0 0.0
      %941 = vmatpush1.msra.mxu0 0.0
      %942 = vmatprep.subr.mxu0 0.0
      %943 = vmatpush1.msra.mxu0 0.0
      %944 = vmatprep.subr.mxu0 0.0
      %945 = vmatpush1.msra.mxu0 0.0
      %946 = vmatprep.subr.mxu0 0.0
      %947 = vmatpush1.msra.mxu0 0.0
      %948 = vmatprep.subr.mxu0 0.0
      %949 = vmatpush1.msra.mxu0 0.0
      %950 = vmatprep.subr.mxu0 0.0
      %951 = vmatpush1.msra.mxu0 0.0
      %952 = vmatprep.subr.mxu0 0.0
      %953 = vmatpush1.msra.mxu0 0.0
      %954 = vmatprep.subr.mxu0 0.0
      %955 = vmatpush1.msra.mxu0 0.0
      %956 = vmatprep.subr.mxu0 0.0
      %957 = vmatpush1.msra.mxu0 0.0
      %958 = vmatprep.subr.mxu0 0.0
      %959 = vmatpush1.msra.mxu0 0.0
      %960 = vmatprep.subr.mxu0 0.0
      %961 = vmatpush1.msra.mxu0 0.0
      %962 = vmatprep.subr.mxu0 0.0
      %963 = vmatpush1.msra.mxu0 0.0
      %964 = vmatprep.subr.mxu0 0.0
      %965 = vmatpush1.msra.mxu0 0.0
      %966 = vmatprep.subr.mxu0 0.0
      %967 = vmatpush1.msra.mxu0 0.0
      %968 = vmatprep.subr.mxu0 0.0
      %969 = vmatpush1.msra.mxu0 0.0
      %970 = vmatprep.mubr.f32.mxu0 0.0
      %971 = vmatmul.mubr.f32.gmra.mrb[0].mxu0 %v751
      %v972 = vpop.f32.mrb[0].mxu0
      %v973 = vadd.f32 %v742, %v972
      %v974 = vpop.f32.mrb[0].mxu0
      %975 = vdwg.mxu0
      %v976 = vmax.f32 %v831, 0.0
      %v977 = vmax.f32 %v833, 0.0
      %v978 = vmax.f32 %v902, 0.0
      %v979 = vmax.f32 %v904, 0.0
      %v980 = vmax.f32 %v973, 0.0
      %v981 = vld [vmem:[%s12] sm:$0xff]
      %v982 = vld [vmem:[%s12 + $0x8] sm:$0xff]
      %v984 = vsel %vm486, %v721, 0
      %986 = vmatprep.subr.mxu0 %v723
      %987 = vmatpush1.msra.mxu0 %v722
      %988 = vmatprep.subr.mxu0 %v728
      %989 = vmatpush1.msra.mxu0 %v727
      %990 = vmatprep.subr.mxu0 0.0
      %991 = vmatpush1.msra.mxu0 0.0
      %992 = vmatprep.subr.mxu0 0.0
      %993 = vmatpush1.msra.mxu0 0.0
      %994 = vmatprep.subr.mxu0 0.0
      %995 = vmatpush1.msra.mxu0 0.0
      %996 = vmatprep.subr.mxu0 0.0
      %997 = vmatpush1.msra.mxu0 0.0
      %998 = vmatprep.subr.mxu0 0.0
      %999 = vmatpush1.msra.mxu0 0.0
      %1000 = vmatprep.subr.mxu0 0.0
      %1001 = vmatpush1.msra.mxu0 0.0
      %1002 = vmatprep.subr.mxu0 0.0
      %1003 = vmatpush1.msra.mxu0 0.0
      %1004 = vmatprep.subr.mxu0 0.0
      %1005 = vmatpush1.msra.mxu0 0.0
      %1006 = vmatprep.subr.mxu0 0.0
      %1007 = vmatpush1.msra.mxu0 0.0
      %1008 = vmatprep.subr.mxu0 0.0
      %1009 = vmatpush1.msra.mxu0 0.0
      %1010 = vmatprep.subr.mxu0 0.0
      %1011 = vmatpush1.msra.mxu0 0.0
      %1012 = vmatprep.subr.mxu0 0.0
      %1013 = vmatpush1.msra.mxu0 0.0
      %1014 = vmatprep.subr.mxu0 0.0
      %1015 = vmatpush1.msra.mxu0 0.0
      %1016 = vmatprep.subr.mxu0 0.0
      %1017 = vmatpush1.msra.mxu0 0.0
      %1018 = vmatprep.subr.mxu0 0.0
      %1019 = vmatpush1.msra.mxu0 0.0
      %1020 = vmatprep.subr.mxu0 0.0
      %1021 = vmatpush1.msra.mxu0 0.0
      %1022 = vmatprep.subr.mxu0 0.0
      %1023 = vmatpush1.msra.mxu0 0.0
      %1024 = vmatprep.subr.mxu0 0.0
      %1025 = vmatpush1.msra.mxu0 0.0
      %1026 = vmatprep.subr.mxu0 0.0
      %1027 = vmatpush1.msra.mxu0 0.0
      %1028 = vmatprep.subr.mxu0 0.0
      %1029 = vmatpush1.msra.mxu0 0.0
      %1030 = vmatprep.subr.mxu0 0.0
      %1031 = vmatpush1.msra.mxu0 0.0
      %1032 = vmatprep.subr.mxu0 0.0
      %1033 = vmatpush1.msra.mxu0 0.0
      %1034 = vmatprep.subr.mxu0 0.0
      %1035 = vmatpush1.msra.mxu0 0.0
      %1036 = vmatprep.subr.mxu0 0.0
      %1037 = vmatpush1.msra.mxu0 0.0
      %1038 = vmatprep.subr.mxu0 0.0
      %1039 = vmatpush1.msra.mxu0 0.0
      %1040 = vmatprep.subr.mxu0 0.0
      %1041 = vmatpush1.msra.mxu0 0.0
      %1042 = vmatprep.subr.mxu0 0.0
      %1043 = vmatpush1.msra.mxu0 0.0
      %1044 = vmatprep.subr.mxu0 0.0
      %1045 = vmatpush1.msra.mxu0 0.0
      %1046 = vmatprep.subr.mxu0 0.0
      %1047 = vmatpush1.msra.mxu0 0.0
      %1048 = vmatprep.subr.mxu0 0.0
      %1049 = vmatpush1.msra.mxu0 0.0
      %1050 = vmatprep.mubr.f32.mxu0 0.0
      %1051 = vmatmul.mubr.f32.gmra.mrb[0].mxu0 %v984
      %v1052 = vpop.f32.mrb[0].mxu0
      %v1053 = vadd.f32 %v976, %v1052
      %v1054 = vpop.f32.mrb[0].mxu0
      %v1055 = vadd.f32 %v977, %v1054
      %1056 = vdwg.mxu0
      %1057 = vmatprep.subr.mxu0 %v725
      %1058 = vmatpush1.msra.mxu0 %v724
      %1059 = vmatprep.subr.mxu0 %v730
      %1060 = vmatpush1.msra.mxu0 %v729
      %1061 = vmatprep.subr.mxu0 0.0
      %1062 = vmatpush1.msra.mxu0 0.0
      %1063 = vmatprep.subr.mxu0 0.0
      %1064 = vmatpush1.msra.mxu0 0.0
      %1065 = vmatprep.subr.mxu0 0.0
      %1066 = vmatpush1.msra.mxu0 0.0
      %1067 = vmatprep.subr.mxu0 0.0
      %1068 = vmatpush1.msra.mxu0 0.0
      %1069 = vmatprep.subr.mxu0 0.0
      %1070 = vmatpush1.msra.mxu0 0.0
      %1071 = vmatprep.subr.mxu0 0.0
      %1072 = vmatpush1.msra.mxu0 0.0
      %1073 = vmatprep.subr.mxu0 0.0
      %1074 = vmatpush1.msra.mxu0 0.0
      %1075 = vmatprep.subr.mxu0 0.0
      %1076 = vmatpush1.msra.mxu0 0.0
      %1077 = vmatprep.subr.mxu0 0.0
      %1078 = vmatpush1.msra.mxu0 0.0
      %1079 = vmatprep.subr.mxu0 0.0
      %1080 = vmatpush1.msra.mxu0 0.0
      %1081 = vmatprep.subr.mxu0 0.0
      %1082 = vmatpush1.msra.mxu0 0.0
      %1083 = vmatprep.subr.mxu0 0.0
      %1084 = vmatpush1.msra.mxu0 0.0
      %1085 = vmatprep.subr.mxu0 0.0
      %1086 = vmatpush1.msra.mxu0 0.0
      %1087 = vmatprep.subr.mxu0 0.0
      %1088 = vmatpush1.msra.mxu0 0.0
      %1089 = vmatprep.subr.mxu0 0.0
      %1090 = vmatpush1.msra.mxu0 0.0
      %1091 = vmatprep.subr.mxu0 0.0
      %1092 = vmatpush1.msra.mxu0 0.0
      %1093 = vmatprep.subr.mxu0 0.0
      %1094 = vmatpush1.msra.mxu0 0.0
      %1095 = vmatprep.subr.mxu0 0.0
      %1096 = vmatpush1.msra.mxu0 0.0
      %1097 = vmatprep.subr.mxu0 0.0
      %1098 = vmatpush1.msra.mxu0 0.0
      %1099 = vmatprep.subr.mxu0 0.0
      %1100 = vmatpush1.msra.mxu0 0.0
      %1101 = vmatprep.subr.mxu0 0.0
      %1102 = vmatpush1.msra.mxu0 0.0
      %1103 = vmatprep.subr.mxu0 0.0
      %1104 = vmatpush1.msra.mxu0 0.0
      %1105 = vmatprep.subr.mxu0 0.0
      %1106 = vmatpush1.msra.mxu0 0.0
      %1107 = vmatprep.subr.mxu0 0.0
      %1108 = vmatpush1.msra.mxu0 0.0
      %1109 = vmatprep.subr.mxu0 0.0
      %1110 = vmatpush1.msra.mxu0 0.0
      %1111 = vmatprep.subr.mxu0 0.0
      %1112 = vmatpush1.msra.mxu0 0.0
      %1113 = vmatprep.subr.mxu0 0.0
      %1114 = vmatpush1.msra.mxu0 0.0
      %1115 = vmatprep.subr.mxu0 0.0
      %1116 = vmatpush1.msra.mxu0 0.0
      %1117 = vmatprep.subr.mxu0 0.0
      %1118 = vmatpush1.msra.mxu0 0.0
      %1119 = vmatprep.subr.mxu0 0.0
      %1120 = vmatpush1.msra.mxu0 0.0
      %1121 = vmatprep.mubr.f32.mxu0 0.0
      %1122 = vmatmul.mubr.f32.gmra.mrb[0].mxu0 %v984
      %v1123 = vpop.f32.mrb[0].mxu0
      %v1124 = vadd.f32 %v978, %v1123
      %v1125 = vpop.f32.mrb[0].mxu0
      %v1126 = vadd.f32 %v979, %v1125
      %1127 = vdwg.mxu0
      %1128 = vmatprep.subr.mxu0 0.0
      %1129 = vmatpush1.msra.mxu0 %v726
      %1130 = vmatprep.subr.mxu0 0.0
      %1131 = vmatpush1.msra.mxu0 %v731
      %1132 = vmatprep.subr.mxu0 0.0
      %1133 = vmatpush1.msra.mxu0 0.0
      %1134 = vmatprep.subr.mxu0 0.0
      %1135 = vmatpush1.msra.mxu0 0.0
      %1136 = vmatprep.subr.mxu0 0.0
      %1137 = vmatpush1.msra.mxu0 0.0
      %1138 = vmatprep.subr.mxu0 0.0
      %1139 = vmatpush1.msra.mxu0 0.0
      %1140 = vmatprep.subr.mxu0 0.0
      %1141 = vmatpush1.msra.mxu0 0.0
      %1142 = vmatprep.subr.mxu0 0.0
      %1143 = vmatpush1.msra.mxu0 0.0
      %1144 = vmatprep.subr.mxu0 0.0
      %1145 = vmatpush1.msra.mxu0 0.0
      %1146 = vmatprep.subr.mxu0 0.0
      %1147 = vmatpush1.msra.mxu0 0.0
      %1148 = vmatprep.subr.mxu0 0.0
      %1149 = vmatpush1.msra.mxu0 0.0
      %1150 = vmatprep.subr.mxu0 0.0
      %1151 = vmatpush1.msra.mxu0 0.0
      %1152 = vmatprep.subr.mxu0 0.0
      %1153 = vmatpush1.msra.mxu0 0.0
      %1154 = vmatprep.subr.mxu0 0.0
      %1155 = vmatpush1.msra.mxu0 0.0
      %1156 = vmatprep.subr.mxu0 0.0
      %1157 = vmatpush1.msra.mxu0 0.0
      %1158 = vmatprep.subr.mxu0 0.0
      %1159 = vmatpush1.msra.mxu0 0.0
      %1160 = vmatprep.subr.mxu0 0.0
      %1161 = vmatpush1.msra.mxu0 0.0
      %1162 = vmatprep.subr.mxu0 0.0
      %1163 = vmatpush1.msra.mxu0 0.0
      %1164 = vmatprep.subr.mxu0 0.0
      %1165 = vmatpush1.msra.mxu0 0.0
      %1166 = vmatprep.subr.mxu0 0.0
      %1167 = vmatpush1.msra.mxu0 0.0
      %1168 = vmatprep.subr.mxu0 0.0
      %1169 = vmatpush1.msra.mxu0 0.0
      %1170 = vmatprep.subr.mxu0 0.0
      %1171 = vmatpush1.msra.mxu0 0.0
      %1172 = vmatprep.subr.mxu0 0.0
      %1173 = vmatpush1.msra.mxu0 0.0
      %1174 = vmatprep.subr.mxu0 0.0
      %1175 = vmatpush1.msra.mxu0 0.0
      %1176 = vmatprep.subr.mxu0 0.0
      %1177 = vmatpush1.msra.mxu0 0.0
      %1178 = vmatprep.subr.mxu0 0.0
      %1179 = vmatpush1.msra.mxu0 0.0
      %1180 = vmatprep.subr.mxu0 0.0
      %1181 = vmatpush1.msra.mxu0 0.0
      %1182 = vmatprep.subr.mxu0 0.0
      %1183 = vmatpush1.msra.mxu0 0.0
      %1184 = vmatprep.subr.mxu0 0.0
      %1185 = vmatpush1.msra.mxu0 0.0
      %1186 = vmatprep.subr.mxu0 0.0
      %1187 = vmatpush1.msra.mxu0 0.0
      %1188 = vmatprep.subr.mxu0 0.0
      %1189 = vmatpush1.msra.mxu0 0.0
      %1190 = vmatprep.subr.mxu0 0.0
      %1191 = vmatpush1.msra.mxu0 0.0
      %1192 = vmatprep.mubr.f32.mxu0 0.0
      %1193 = vmatmul.mubr.f32.gmra.mrb[0].mxu0 %v984
      %v1194 = vpop.f32.mrb[0].mxu0
      %v1195 = vadd.f32 %v980, %v1194
      %v1196 = vpop.f32.mrb[0].mxu0
      %1197 = vdwg.mxu0
      %v1198 = vld [vmem:[%s13] sm:$0xff]
      %v1199 = vld [vmem:[%s13 + $0x8] sm:$0xff]
      %1201 = vset.pattern.permute.xlu0 0
      %1202 = vperm.xlu0 %1201, %v1198
      %v1203 = vpop.permute.xlu0 %1202
      %1206 = vset.pattern.permute.xlu0 0
      %1207 = vperm.xlu0 %1206, %v1199
      %v1208 = vpop.permute.xlu0 %1207
      %v1211 = vsel %vm749, %v981, 0
      %v1214 = vsel %vm749, %v982, 0
      %v1217 = vsel %vm753, %v1053, 0
      %v1220 = vsel %vm753, %v1055, 0
      %v1223 = vsel %vm753, %v1124, 0
      %v1226 = vsel %vm753, %v1126, 0
      %v1229 = vsel %vm753, %v1195, 0
      %1231 = vmatprep.subr.mxu0 %v1220
      %1232 = vmatpush1.msra.mxu0 %v1217
      %1233 = vmatprep.subr.mxu0 0.0
      %1234 = vmatpush1.msra.mxu0 0.0
      %1235 = vmatprep.subr.mxu0 0.0
      %1236 = vmatpush1.msra.mxu0 0.0
      %1237 = vmatprep.subr.mxu0 0.0
      %1238 = vmatpush1.msra.mxu0 0.0
      %1239 = vmatprep.subr.mxu0 0.0
      %1240 = vmatpush1.msra.mxu0 0.0
      %1241 = vmatprep.subr.mxu0 0.0
      %1242 = vmatpush1.msra.mxu0 0.0
      %1243 = vmatprep.subr.mxu0 0.0
      %1244 = vmatpush1.msra.mxu0 0.0
      %1245 = vmatprep.subr.mxu0 0.0
      %1246 = vmatpush1.msra.mxu0 0.0
      %1247 = vmatprep.subr.mxu0 0.0
      %1248 = vmatpush1.msra.mxu0 0.0
      %1249 = vmatprep.subr.mxu0 0.0
      %1250 = vmatpush1.msra.mxu0 0.0
      %1251 = vmatprep.subr.mxu0 0.0
      %1252 = vmatpush1.msra.mxu0 0.0
      %1253 = vmatprep.subr.mxu0 0.0
      %1254 = vmatpush1.msra.mxu0 0.0
      %1255 = vmatprep.subr.mxu0 0.0
      %1256 = vmatpush1.msra.mxu0 0.0
      %1257 = vmatprep.subr.mxu0 0.0
      %1258 = vmatpush1.msra.mxu0 0.0
      %1259 = vmatprep.subr.mxu0 0.0
      %1260 = vmatpush1.msra.mxu0 0.0
      %1261 = vmatprep.subr.mxu0 0.0
      %1262 = vmatpush1.msra.mxu0 0.0
      %1263 = vmatprep.subr.mxu0 0.0
      %1264 = vmatpush1.msra.mxu0 0.0
      %1265 = vmatprep.subr.mxu0 0.0
      %1266 = vmatpush1.msra.mxu0 0.0
      %1267 = vmatprep.subr.mxu0 0.0
      %1268 = vmatpush1.msra.mxu0 0.0
      %1269 = vmatprep.subr.mxu0 0.0
      %1270 = vmatpush1.msra.mxu0 0.0
      %1271 = vmatprep.subr.mxu0 0.0
      %1272 = vmatpush1.msra.mxu0 0.0
      %1273 = vmatprep.subr.mxu0 0.0
      %1274 = vmatpush1.msra.mxu0 0.0
      %1275 = vmatprep.subr.mxu0 0.0
      %1276 = vmatpush1.msra.mxu0 0.0
      %1277 = vmatprep.subr.mxu0 0.0
      %1278 = vmatpush1.msra.mxu0 0.0
      %1279 = vmatprep.subr.mxu0 0.0
      %1280 = vmatpush1.msra.mxu0 0.0
      %1281 = vmatprep.subr.mxu0 0.0
      %1282 = vmatpush1.msra.mxu0 0.0
      %1283 = vmatprep.subr.mxu0 0.0
      %1284 = vmatpush1.msra.mxu0 0.0
      %1285 = vmatprep.subr.mxu0 0.0
      %1286 = vmatpush1.msra.mxu0 0.0
      %1287 = vmatprep.subr.mxu0 0.0
      %1288 = vmatpush1.msra.mxu0 0.0
      %1289 = vmatprep.subr.mxu0 0.0
      %1290 = vmatpush1.msra.mxu0 0.0
      %1291 = vmatprep.subr.mxu0 0.0
      %1292 = vmatpush1.msra.mxu0 0.0
      %1293 = vmatprep.subr.mxu0 0.0
      %1294 = vmatpush1.msra.mxu0 0.0
      %1295 = vmatprep.mubr.f32.mxu0 0.0
      %1296 = vmatmul.mubr.f32.gmra.mrb[0].mxu0 %v1211
      %v1297 = vpop.f32.mrb[0].mxu0
      %v1298 = vadd.f32 %v1203, %v1297
      %v1299 = vpop.f32.mrb[0].mxu0
      %v1300 = vadd.f32 %v1203, %v1299
      %1301 = vmatprep.mubr.f32.mxu0 0.0
      %1302 = vmatmul.mubr.f32.gmra.mrb[0].mxu0 %v1214
      %v1303 = vpop.f32.mrb[0].mxu0
      %v1304 = vadd.f32 %v1208, %v1303
      %v1305 = vpop.f32.mrb[0].mxu0
      %v1306 = vadd.f32 %v1208, %v1305
      %1307 = vdwg.mxu0
      %1308 = vmatprep.subr.mxu0 %v1226
      %1309 = vmatpush1.msra.mxu0 %v1223
      %1310 = vmatprep.subr.mxu0 0.0
      %1311 = vmatpush1.msra.mxu0 0.0
      %1312 = vmatprep.subr.mxu0 0.0
      %1313 = vmatpush1.msra.mxu0 0.0
      %1314 = vmatprep.subr.mxu0 0.0
      %1315 = vmatpush1.msra.mxu0 0.0
      %1316 = vmatprep.subr.mxu0 0.0
      %1317 = vmatpush1.msra.mxu0 0.0
      %1318 = vmatprep.subr.mxu0 0.0
      %1319 = vmatpush1.msra.mxu0 0.0
      %1320 = vmatprep.subr.mxu0 0.0
      %1321 = vmatpush1.msra.mxu0 0.0
      %1322 = vmatprep.subr.mxu0 0.0
      %1323 = vmatpush1.msra.mxu0 0.0
      %1324 = vmatprep.subr.mxu0 0.0
      %1325 = vmatpush1.msra.mxu0 0.0
      %1326 = vmatprep.subr.mxu0 0.0
      %1327 = vmatpush1.msra.mxu0 0.0
      %1328 = vmatprep.subr.mxu0 0.0
      %1329 = vmatpush1.msra.mxu0 0.0
      %1330 = vmatprep.subr.mxu0 0.0
      %1331 = vmatpush1.msra.mxu0 0.0
      %1332 = vmatprep.subr.mxu0 0.0
      %1333 = vmatpush1.msra.mxu0 0.0
      %1334 = vmatprep.subr.mxu0 0.0
      %1335 = vmatpush1.msra.mxu0 0.0
      %1336 = vmatprep.subr.mxu0 0.0
      %1337 = vmatpush1.msra.mxu0 0.0
      %1338 = vmatprep.subr.mxu0 0.0
      %1339 = vmatpush1.msra.mxu0 0.0
      %1340 = vmatprep.subr.mxu0 0.0
      %1341 = vmatpush1.msra.mxu0 0.0
      %1342 = vmatprep.subr.mxu0 0.0
      %1343 = vmatpush1.msra.mxu0 0.0
      %1344 = vmatprep.subr.mxu0 0.0
      %1345 = vmatpush1.msra.mxu0 0.0
      %1346 = vmatprep.subr.mxu0 0.0
      %1347 = vmatpush1.msra.mxu0 0.0
      %1348 = vmatprep.subr.mxu0 0.0
      %1349 = vmatpush1.msra.mxu0 0.0
      %1350 = vmatprep.subr.mxu0 0.0
      %1351 = vmatpush1.msra.mxu0 0.0
      %1352 = vmatprep.subr.mxu0 0.0
      %1353 = vmatpush1.msra.mxu0 0.0
      %1354 = vmatprep.subr.mxu0 0.0
      %1355 = vmatpush1.msra.mxu0 0.0
      %1356 = vmatprep.subr.mxu0 0.0
      %1357 = vmatpush1.msra.mxu0 0.0
      %1358 = vmatprep.subr.mxu0 0.0
      %1359 = vmatpush1.msra.mxu0 0.0
      %1360 = vmatprep.subr.mxu0 0.0
      %1361 = vmatpush1.msra.mxu0 0.0
      %1362 = vmatprep.subr.mxu0 0.0
      %1363 = vmatpush1.msra.mxu0 0.0
      %1364 = vmatprep.subr.mxu0 0.0
      %1365 = vmatpush1.msra.mxu0 0.0
      %1366 = vmatprep.subr.mxu0 0.0
      %1367 = vmatpush1.msra.mxu0 0.0
      %1368 = vmatprep.subr.mxu0 0.0
      %1369 = vmatpush1.msra.mxu0 0.0
      %1370 = vmatprep.subr.mxu0 0.0
      %1371 = vmatpush1.msra.mxu0 0.0
      %1372 = vmatprep.mubr.f32.mxu0 0.0
      %1373 = vmatmul.mubr.f32.gmra.mrb[0].mxu0 %v1211
      %v1374 = vpop.f32.mrb[0].mxu0
      %v1375 = vadd.f32 %v1203, %v1374
      %v1376 = vpop.f32.mrb[0].mxu0
      %v1377 = vadd.f32 %v1203, %v1376
      %1378 = vmatprep.mubr.f32.mxu0 0.0
      %1379 = vmatmul.mubr.f32.gmra.mrb[0].mxu0 %v1214
      %v1380 = vpop.f32.mrb[0].mxu0
      %v1381 = vadd.f32 %v1208, %v1380
      %v1382 = vpop.f32.mrb[0].mxu0
      %v1383 = vadd.f32 %v1208, %v1382
      %1384 = vdwg.mxu0
      %1385 = vmatprep.subr.mxu0 0.0
      %1386 = vmatpush1.msra.mxu0 %v1229
      %1387 = vmatprep.subr.mxu0 0.0
      %1388 = vmatpush1.msra.mxu0 0.0
      %1389 = vmatprep.subr.mxu0 0.0
      %1390 = vmatpush1.msra.mxu0 0.0
      %1391 = vmatprep.subr.mxu0 0.0
      %1392 = vmatpush1.msra.mxu0 0.0
      %1393 = vmatprep.subr.mxu0 0.0
      %1394 = vmatpush1.msra.mxu0 0.0
      %1395 = vmatprep.subr.mxu0 0.0
      %1396 = vmatpush1.msra.mxu0 0.0
      %1397 = vmatprep.subr.mxu0 0.0
      %1398 = vmatpush1.msra.mxu0 0.0
      %1399 = vmatprep.subr.mxu0 0.0
      %1400 = vmatpush1.msra.mxu0 0.0
      %1401 = vmatprep.subr.mxu0 0.0
      %1402 = vmatpush1.msra.mxu0 0.0
      %1403 = vmatprep.subr.mxu0 0.0
      %1404 = vmatpush1.msra.mxu0 0.0
      %1405 = vmatprep.subr.mxu0 0.0
      %1406 = vmatpush1.msra.mxu0 0.0
      %1407 = vmatprep.subr.mxu0 0.0
      %1408 = vmatpush1.msra.mxu0 0.0
      %1409 = vmatprep.subr.mxu0 0.0
      %1410 = vmatpush1.msra.mxu0 0.0
      %1411 = vmatprep.subr.mxu0 0.0
      %1412 = vmatpush1.msra.mxu0 0.0
      %1413 = vmatprep.subr.mxu0 0.0
      %1414 = vmatpush1.msra.mxu0 0.0
      %1415 = vmatprep.subr.mxu0 0.0
      %1416 = vmatpush1.msra.mxu0 0.0
      %1417 = vmatprep.subr.mxu0 0.0
      %1418 = vmatpush1.msra.mxu0 0.0
      %1419 = vmatprep.subr.mxu0 0.0
      %1420 = vmatpush1.msra.mxu0 0.0
      %1421 = vmatprep.subr.mxu0 0.0
      %1422 = vmatpush1.msra.mxu0 0.0
      %1423 = vmatprep.subr.mxu0 0.0
      %1424 = vmatpush1.msra.mxu0 0.0
      %1425 = vmatprep.subr.mxu0 0.0
      %1426 = vmatpush1.msra.mxu0 0.0
      %1427 = vmatprep.subr.mxu0 0.0
      %1428 = vmatpush1.msra.mxu0 0.0
      %1429 = vmatprep.subr.mxu0 0.0
      %1430 = vmatpush1.msra.mxu0 0.0
      %1431 = vmatprep.subr.mxu0 0.0
      %1432 = vmatpush1.msra.mxu0 0.0
      %1433 = vmatprep.subr.mxu0 0.0
      %1434 = vmatpush1.msra.mxu0 0.0
      %1435 = vmatprep.subr.mxu0 0.0
      %1436 = vmatpush1.msra.mxu0 0.0
      %1437 = vmatprep.subr.mxu0 0.0
      %1438 = vmatpush1.msra.mxu0 0.0
      %1439 = vmatprep.subr.mxu0 0.0
      %1440 = vmatpush1.msra.mxu0 0.0
      %1441 = vmatprep.subr.mxu0 0.0
      %1442 = vmatpush1.msra.mxu0 0.0
      %1443 = vmatprep.subr.mxu0 0.0
      %1444 = vmatpush1.msra.mxu0 0.0
      %1445 = vmatprep.subr.mxu0 0.0
      %1446 = vmatpush1.msra.mxu0 0.0
      %1447 = vmatprep.subr.mxu0 0.0
      %1448 = vmatpush1.msra.mxu0 0.0
      %1449 = vmatprep.mubr.f32.mxu0 0.0
      %1450 = vmatmul.mubr.f32.gmra.mrb[0].mxu0 %v1211
      %v1451 = vpop.f32.mrb[0].mxu0
      %v1452 = vadd.f32 %v1203, %v1451
      %v1453 = vpop.f32.mrb[0].mxu0
      %1454 = vmatprep.mubr.f32.mxu0 0.0
      %1455 = vmatmul.mubr.f32.gmra.mrb[0].mxu0 %v1214
      %v1456 = vpop.f32.mrb[0].mxu0
      %v1457 = vadd.f32 %v1208, %v1456
      %v1458 = vpop.f32.mrb[0].mxu0
      %1459 = vdwg.mxu0
      %v1460 = vmax.f32 %v1298, 0.0
      %v1461 = vmax.f32 %v1300, 0.0
      %v1462 = vmax.f32 %v1375, 0.0
      %v1463 = vmax.f32 %v1377, 0.0
      %v1464 = vmax.f32 %v1452, 0.0
      %v1465 = vmax.f32 %v1304, 0.0
      %v1466 = vmax.f32 %v1306, 0.0
      %v1467 = vmax.f32 %v1381, 0.0
      %v1468 = vmax.f32 %v1383, 0.0
      %v1469 = vmax.f32 %v1457, 0.0
      %v1470 = vsub.f32 0.0, %v1460
      %v1471 = vsub.f32 0.0, %v1461
      %v1472 = vsub.f32 0.0, %v1462
      %v1473 = vsub.f32 0.0, %v1463
      %v1474 = vsub.f32 0.0, %v1464
      %v1475 = vsub.f32 0.0, %v1465
      %v1476 = vsub.f32 0.0, %v1466
      %v1477 = vsub.f32 0.0, %v1467
      %v1478 = vsub.f32 0.0, %v1468
      %v1479 = vsub.f32 0.0, %v1469
      %v1480 = vmul.f32 %v1470, 1.442695
      %v1481 = vpow.pop %v1480
      %v1482 = vmul.f32 %v1471, 1.442695
      %v1483 = vpow.pop %v1482
      %v1484 = vmul.f32 %v1472, 1.442695
      %v1485 = vpow.pop %v1484
      %v1486 = vmul.f32 %v1473, 1.442695
      %v1487 = vpow.pop %v1486
      %v1488 = vmul.f32 %v1474, 1.442695
      %v1489 = vpow.pop %v1488
      %v1490 = vmul.f32 %v1475, 1.442695
      %v1491 = vpow.pop %v1490
      %v1492 = vmul.f32 %v1476, 1.442695
      %v1493 = vpow.pop %v1492
      %v1494 = vmul.f32 %v1477, 1.442695
      %v1495 = vpow.pop %v1494
      %v1496 = vmul.f32 %v1478, 1.442695
      %v1497 = vpow.pop %v1496
      %v1498 = vmul.f32 %v1479, 1.442695
      %v1499 = vpow.pop %v1498
      %v1500 = vadd.f32 %v1481, 1.0
      %v1501 = vadd.f32 %v1483, 1.0
      %v1502 = vadd.f32 %v1485, 1.0
      %v1503 = vadd.f32 %v1487, 1.0
      %v1504 = vadd.f32 %v1489, 1.0
      %v1505 = vadd.f32 %v1491, 1.0
      %v1506 = vadd.f32 %v1493, 1.0
      %v1507 = vadd.f32 %v1495, 1.0
      %v1508 = vadd.f32 %v1497, 1.0
      %v1509 = vadd.f32 %v1499, 1.0
      %v1510 = vrcp.pop %v1500
      %v1511 = vrcp.pop %v1501
      %v1512 = vrcp.pop %v1502
      %v1513 = vrcp.pop %v1503
      %v1514 = vrcp.pop %v1504
      %v1515 = vrcp.pop %v1505
      %v1516 = vrcp.pop %v1506
      %v1517 = vrcp.pop %v1507
      %v1518 = vrcp.pop %v1508
      %v1519 = vrcp.pop %v1509
      %v1520 = vmul.f32 %v1460, %v1510
      %v1521 = vmul.f32 %v1461, %v1511
      %v1522 = vmul.f32 %v1462, %v1512
      %v1523 = vmul.f32 %v1463, %v1513
      %v1524 = vmul.f32 %v1464, %v1514
      %v1525 = vmul.f32 %v1465, %v1515
      %v1526 = vmul.f32 %v1466, %v1516
      %v1527 = vmul.f32 %v1467, %v1517
      %v1528 = vmul.f32 %v1468, %v1518
      %v1529 = vmul.f32 %v1469, %v1519
      %1530 = vst [vmem:[%s481] sm:$0xff] %v1520
      %1531 = vst [vmem:[%s481 + $0x8] sm:$0xff] %v1521
      %1532 = vst [vmem:[%s481 + $0x10] sm:$0xff] %v1522
      %1533 = vst [vmem:[%s481 + $0x18] sm:$0xff] %v1523
      %vm1534 = vcmask 523264
      %1535 = vst.msk [vmem:[%s481 + $0x20] sm:$0xff] %vm1534, %v1524
      %1536 = vst [vmem:[%s481 + $0x28] sm:$0xff] %v1525
      %1537 = vst [vmem:[%s481 + $0x30] sm:$0xff] %v1526
      %1538 = vst [vmem:[%s481 + $0x38] sm:$0xff] %v1527
      %1539 = vst [vmem:[%s481 + $0x40] sm:$0xff] %v1528
      %1540 = vst.msk [vmem:[%s481 + $0x48] sm:$0xff] %vm1534, %v1529
      %p1541 = scmp.lt.s32.totalorder %s25, 1
      %s1542 = scalar_select %p1541, %s25, 1
      %s1543 = smul.addr %s1542, 10
      %s1544 = smul.addr %s1543, 8
      %s1545 = scalar_lea.vmem %s14, %s1544
      // Predicated region
      $region77: #{esa_forward.5} parent=75 // pred_check
        %p1546 = pneg %p347
      $region78: #{esa_forward.5} parent=75 // pred_check_branch
        %1548 = sbr.rel (%p1546) target = $region80
      $region79: #{esa_forward.5} parent=75 // pred_region
        _
      $region80: #{esa_forward.5} parent=75 // pred_fallthru
        _
    $region76: #{esa_forward.5} parent=5 // pred_fallthru
      _
    %p1549 = scmp.le.s32.totalorder 2, %s20
    // Predicated region
    $region81: #{esa_forward.5} parent=5 // pred_check
      %p1550 = pneg %p1549
    $region82: #{esa_forward.5} parent=5 // pred_check_branch
      %1552 = sbr.rel (%p1550) target = $region84
    $region83: #{esa_forward.5} parent=5 // pred_region
      %s1553 = ssub.s32 %s20, 2
      // Predicated region
      $region85: #{esa_forward.5} parent=83 // pred_check
        %p1554 = pneg %p353
      $region86: #{esa_forward.5} parent=83 // pred_check_branch
        %1556 = sbr.rel (%p1554) target = $region88
      $region87: #{esa_forward.5} parent=83 // pred_region
        %p1557 = scmp.lt.s32.totalorder %s26, 1
        %s1558 = scalar_select %p1557, %s26, 1
        %s1559 = smul.addr %s1558, 10
        %s1560 = smul.addr %s1559, 8
        %s1561 = scalar_lea.vmem %s14, %s1560
      $region88: #{esa_forward.5} parent=83 // pred_fallthru
        _
    $region84: #{esa_forward.5} parent=5 // pred_fallthru
      _
  $region6: #{esa_forward.5} parent=0 // loop_footer
    %s24 = sadd.s32 1, %s20
  $region7: #{esa_forward.5} parent=0 // loop_footer_branch
    %19 = sbr.rel target = $region3
  $region8: #{esa_forward.5} parent=0 // loop_exit
    _

</llo_original>
